<compile_context>
chip_gen: v7x
topology: tpu7x:2x2x1
jax: 0.10.0
libtpu: 0.0.40
codegen_flags: <defaults>
</compile_context>

<pallas_src>
import math

import jax
import jax.numpy as jnp
from jax.experimental import pallas as pl
from jax.experimental.pallas import tpu as pltpu

# ---- small, module-consistent hyperparameters -------------------------------
SRC_VOCAB = 24     # input_dim
EMB_DIM = 16       # emb_dim
HID_DIM = 32       # hid_dim
N_LAYERS = 2       # n_layers
BATCH = 2
SRC_LEN = 6
BATCH_PAD = 8      # pad batch to the f32 sublane width

_VMEM = pl.BlockSpec(memory_space=pltpu.MemorySpace.VMEM)


# ---- fused encoder kernel ----------------------------------------------------
def _encoder_lstm_kernel(ids_ref, emb_ref, *rest):
    """Fused: embedding (for all timesteps) + N_LAYERS LSTM over the full sequence.

    rest = [w_ih_0, w_hh_0, b_0, ..., w_ih_{L-1}, w_hh_{L-1}, b_{L-1}, h_out_ref, c_out_ref]
    ids_ref : (T*Bp, 1) int32 token ids (batch already padded to Bp)
    weights : right-multiply layout, w_ih_l (in_dim, 4H), w_hh_l (H, 4H), b_l (1, 4H)
              (b_l = b_ih + b_hh folded; PyTorch gate order i, f, g, o)
    outputs : h_out/c_out (N_LAYERS, Bp, H)
    """
    h_out_ref, c_out_ref = rest[-2], rest[-1]
    wrefs = rest[:-2]
    n_layers = len(wrefs) // 3

    _, Bp, H = h_out_ref.shape
    T = ids_ref.shape[0] // Bp
    V = emb_ref.shape[0]

    # --- embedding + layer-0 input projection, fused and hoisted out of the time loop ---
    # one_hot @ (emb @ W_ih0) + b0  ==  (one_hot @ emb) @ W_ih0 + b0
    ids = ids_ref[...]                                               # (T*Bp, 1) int32
    lane = jax.lax.broadcasted_iota(jnp.int32, (T * Bp, V), 1)
    one_hot = (lane == ids).astype(jnp.float32)                      # (T*Bp, V)
    # TODO(synk): nn.Dropout on the embedded inputs is identity in eval mode; training-mode
    #             stochastic dropout is not modeled here.

    w_ih0 = wrefs[0][...]                                            # (E, 4H)
    w_hh0 = wrefs[1][...]                                            # (H, 4H)
    b0 = wrefs[2][...]                                               # (1, 4H)
    emb_proj0 = jnp.dot(emb_ref[...], w_ih0,
                        preferred_element_type=jnp.float32)          # (V, 4H)
    xproj0 = jnp.dot(one_hot, emb_proj0,
                     preferred_element_type=jnp.float32) + b0        # (T*Bp, 4H)

    # --- remaining-layer weights: load once, pre-broadcast biases (hoisted out of time loop) ---
    w_rest = []
    for l in range(1, n_layers):
        w_ih = wrefs[3 * l][...]
        w_hh = wrefs[3 * l + 1][...]
        b = jnp.broadcast_to(wrefs[3 * l + 2][...], (Bp, 4 * H))
        w_rest.append((w_ih, w_hh, b))

    def cell(gates, c_prev):
        i_g = jax.nn.sigmoid(gates[:, 0:H])
        f_g = jax.nn.sigmoid(gates[:, H:2 * H])
        g_g = jnp.tanh(gates[:, 2 * H:3 * H])
        o_g = jax.nn.sigmoid(gates[:, 3 * H:4 * H])
        c_new = f_g * c_prev + i_g * g_g
        h_new = o_g * jnp.tanh(c_new)
        return h_new, c_new

    zeros = jnp.zeros((Bp, H), jnp.float32)
    h = [zeros] * n_layers
    c = [zeros] * n_layers

    # T and n_layers are tiny and static -> full unroll; h/c stay in vregs across the whole loop.
    for t in range(T):
        g0 = xproj0[t * Bp:(t + 1) * Bp, :] + jnp.dot(
            h[0], w_hh0, preferred_element_type=jnp.float32)
        h[0], c[0] = cell(g0, c[0])
        x = h[0]
        for l in range(1, n_layers):
            w_ih, w_hh, b = w_rest[l - 1]
            g = (jnp.dot(x, w_ih, preferred_element_type=jnp.float32)
                 + jnp.dot(h[l], w_hh, preferred_element_type=jnp.float32) + b)
            h[l], c[l] = cell(g, c[l])
            x = h[l]

    for l in range(n_layers):
        h_out_ref[l] = h[l]
        c_out_ref[l] = c[l]


# ---- host wrapper (jit'ed) ----------------------------------------------------
@jax.jit
def encoder_forward(params, src):
    """src: (T, B) int32 token ids -> (hidden, cell), each (N_LAYERS, B, HID_DIM)."""
    T, B = src.shape
    src_p = jnp.zeros((T, BATCH_PAD), jnp.int32).at[:, :B].set(src)
    ids = src_p.reshape(T * BATCH_PAD, 1)

    inputs = [ids, params["emb"]]
    for layer in params["layers"]:
        inputs.extend([layer["w_ih"], layer["w_hh"], layer["b"]])

    out_shape = (
        jax.ShapeDtypeStruct((N_LAYERS, BATCH_PAD, HID_DIM), jnp.float32),
        jax.ShapeDtypeStruct((N_LAYERS, BATCH_PAD, HID_DIM), jnp.float32),
    )
    hidden, cell = pl.pallas_call(
        _encoder_lstm_kernel,
        out_shape=out_shape,
        in_specs=[_VMEM] * len(inputs),
        out_specs=(_VMEM, _VMEM),
    )(*inputs)
    return hidden[:, :B, :], cell[:, :B, :]


# ---- parameter init (PyTorch-like: LSTM uniform(-1/sqrt(H), 1/sqrt(H)), Embedding N(0,1)) ----
def init_params(key):
    k = 1.0 / math.sqrt(HID_DIM)

    def uni(key, shape):
        return jax.random.uniform(key, shape, jnp.float32, minval=-k, maxval=k)

    keys = iter(jax.random.split(key, 1 + 4 * N_LAYERS))
    params = {"emb": jax.random.normal(next(keys), (SRC_VOCAB, EMB_DIM), jnp.float32),
              "layers": []}
    for layer in range(N_LAYERS):
        in_dim = EMB_DIM if layer == 0 else HID_DIM
        b_ih = uni(next(keys), (1, 4 * HID_DIM))
        b_hh = uni(next(keys), (1, 4 * HID_DIM))
        params["layers"].append({
            "w_ih": uni(next(keys), (in_dim, 4 * HID_DIM)),
            "w_hh": uni(next(keys), (HID_DIM, 4 * HID_DIM)),
            "b": b_ih + b_hh,   # two independent draws, summed (matches nn.LSTM forward math)
        })
    return params


# ---- pure-JAX reference (for correctness check only) --------------------------
def encoder_reference(params, src):
    T, B = src.shape
    H = HID_DIM
    x_seq = params["emb"][src]                     # (T, B, E)
    h = [jnp.zeros((B, H), jnp.float32) for _ in range(N_LAYERS)]
    c = [jnp.zeros((B, H), jnp.float32) for _ in range(N_LAYERS)]
    for t in range(T):
        x = x_seq[t]
        for l in range(N_LAYERS):
            p = params["layers"][l]
            gates = x @ p["w_ih"] + h[l] @ p["w_hh"] + p["b"]
            i_g = jax.nn.sigmoid(gates[:, 0:H])
            f_g = jax.nn.sigmoid(gates[:, H:2 * H])
            g_g = jnp.tanh(gates[:, 2 * H:3 * H])
            o_g = jax.nn.sigmoid(gates[:, 3 * H:4 * H])
            c[l] = f_g * c[l] + i_g * g_g
            h[l] = o_g * jnp.tanh(c[l])
            x = h[l]
    return jnp.stack(h), jnp.stack(c)


# ---- main ---------------------------------------------------------------------
if __name__ == "__main__":
    key = jax.random.PRNGKey(0)
    k_param, k_src = jax.random.split(key)

    params = init_params(k_param)
    src = jax.random.randint(k_src, (SRC_LEN, BATCH), 0, SRC_VOCAB, dtype=jnp.int32)

    hidden, cell = encoder_forward(params, src)
    hidden, cell = jax.block_until_ready((hidden, cell))

    assert hidden.shape == (N_LAYERS, BATCH, HID_DIM)
    assert cell.shape == (N_LAYERS, BATCH, HID_DIM)

    h_ref, c_ref = encoder_reference(params, src)
    err = max(float(jnp.max(jnp.abs(hidden - h_ref))),
              float(jnp.max(jnp.abs(cell - c_ref))))
    assert err < 1e-2, f"mismatch vs pure-JAX reference: {err}"

    print("KERNEL_OK")
</pallas_src>

<mosaic_0001>
module attributes {stable_mosaic.version = 11 : i64} {
  func.func @_encoder_lstm_kernel(%arg0: memref<48x1xi32, #tpu.memory_space<vmem>>, %arg1: memref<24x16xf32, #tpu.memory_space<vmem>>, %arg2: memref<16x128xf32, #tpu.memory_space<vmem>>, %arg3: memref<32x128xf32, #tpu.memory_space<vmem>>, %arg4: memref<1x128xf32, #tpu.memory_space<vmem>>, %arg5: memref<32x128xf32, #tpu.memory_space<vmem>>, %arg6: memref<32x128xf32, #tpu.memory_space<vmem>>, %arg7: memref<1x128xf32, #tpu.memory_space<vmem>>, %arg8: memref<2x8x32xf32, #tpu.memory_space<vmem>>, %arg9: memref<2x8x32xf32, #tpu.memory_space<vmem>>) attributes {dimension_semantics = [], scalar_prefetch = 0 : i64, scratch_operands = 0 : i64, tpu.core_type = #tpu.core_type<tc>} {
    %c0 = arith.constant 0 : index
    %c0_0 = arith.constant 0 : index
    %0 = vector.load %arg0[%c0, %c0_0] : memref<48x1xi32, #tpu.memory_space<vmem>>, vector<48x1xi32>
    %1 = tpu.iota {dimensions = array<i32: 1>} : vector<48x24xi32>
    %2 = vector.broadcast %0 : vector<48x1xi32> to vector<48x24xi32>
    %3 = arith.cmpi eq, %1, %2 : vector<48x24xi32>
    %4 = arith.extui %3 : vector<48x24xi1> to vector<48x24xi32>
    %5 = arith.sitofp %4 : vector<48x24xi32> to vector<48x24xf32>
    %c0_1 = arith.constant 0 : index
    %c0_2 = arith.constant 0 : index
    %6 = vector.load %arg2[%c0_1, %c0_2] : memref<16x128xf32, #tpu.memory_space<vmem>>, vector<16x128xf32>
    %c0_3 = arith.constant 0 : index
    %c0_4 = arith.constant 0 : index
    %7 = vector.load %arg3[%c0_3, %c0_4] : memref<32x128xf32, #tpu.memory_space<vmem>>, vector<32x128xf32>
    %c0_5 = arith.constant 0 : index
    %c0_6 = arith.constant 0 : index
    %8 = vector.load %arg4[%c0_5, %c0_6] : memref<1x128xf32, #tpu.memory_space<vmem>>, vector<1x128xf32>
    %c0_7 = arith.constant 0 : index
    %c0_8 = arith.constant 0 : index
    %9 = vector.load %arg1[%c0_7, %c0_8] : memref<24x16xf32, #tpu.memory_space<vmem>>, vector<24x16xf32>
    %cst = arith.constant dense<0.000000e+00> : vector<24x128xf32>
    %10 = tpu.matmul %9, %6, %cst {dimension_numbers = #tpu.dot_dimension_numbers<[1], [0], [0], [1], [0, 0, 1, 1], [], []>} : vector<24x16xf32>, vector<16x128xf32>, vector<24x128xf32> -> vector<24x128xf32>
    %cst_9 = arith.constant dense<0.000000e+00> : vector<48x128xf32>
    %11 = tpu.matmul %5, %10, %cst_9 {dimension_numbers = #tpu.dot_dimension_numbers<[1], [0], [0], [1], [0, 0, 1, 1], [], []>} : vector<48x24xf32>, vector<24x128xf32>, vector<48x128xf32> -> vector<48x128xf32>
    %12 = vector.broadcast %8 : vector<1x128xf32> to vector<48x128xf32>
    %13 = arith.addf %11, %12 : vector<48x128xf32>
    %c0_10 = arith.constant 0 : index
    %c0_11 = arith.constant 0 : index
    %14 = vector.load %arg5[%c0_10, %c0_11] : memref<32x128xf32, #tpu.memory_space<vmem>>, vector<32x128xf32>
    %c0_12 = arith.constant 0 : index
    %c0_13 = arith.constant 0 : index
    %15 = vector.load %arg6[%c0_12, %c0_13] : memref<32x128xf32, #tpu.memory_space<vmem>>, vector<32x128xf32>
    %c0_14 = arith.constant 0 : index
    %c0_15 = arith.constant 0 : index
    %16 = vector.load %arg7[%c0_14, %c0_15] : memref<1x128xf32, #tpu.memory_space<vmem>>, vector<1x128xf32>
    %17 = vector.shape_cast %16 : vector<1x128xf32> to vector<1x128xf32>
    %18 = vector.broadcast %17 : vector<1x128xf32> to vector<8x128xf32>
    %cst_16 = arith.constant 0.000000e+00 : f32
    %19 = vector.broadcast %cst_16 : f32 to vector<8x32xf32>
    %20 = vector.extract_strided_slice %13 {offsets = [0, 0], sizes = [8, 128], strides = [1, 1]} : vector<48x128xf32> to vector<8x128xf32>
    %cst_17 = arith.constant dense<0.000000e+00> : vector<8x128xf32>
    %21 = tpu.matmul %19, %7, %cst_17 {dimension_numbers = #tpu.dot_dimension_numbers<[1], [0], [0], [1], [0, 0, 1, 1], [], []>} : vector<8x32xf32>, vector<32x128xf32>, vector<8x128xf32> -> vector<8x128xf32>
    %22 = arith.addf %20, %21 : vector<8x128xf32>
    %23 = vector.extract_strided_slice %22 {offsets = [0, 0], sizes = [8, 32], strides = [1, 1]} : vector<8x128xf32> to vector<8x32xf32>
    %24 = arith.negf %23 : vector<8x32xf32>
    %25 = math.exp %24 : vector<8x32xf32>
    %cst_18 = arith.constant 1.000000e+00 : f32
    %26 = vector.broadcast %cst_18 : f32 to vector<8x32xf32>
    %27 = arith.addf %26, %25 : vector<8x32xf32>
    %28 = arith.divf %26, %27 : vector<8x32xf32>
    %29 = vector.extract_strided_slice %22 {offsets = [0, 32], sizes = [8, 32], strides = [1, 1]} : vector<8x128xf32> to vector<8x32xf32>
    %30 = arith.negf %29 : vector<8x32xf32>
    %31 = math.exp %30 : vector<8x32xf32>
    %cst_19 = arith.constant 1.000000e+00 : f32
    %32 = vector.broadcast %cst_19 : f32 to vector<8x32xf32>
    %33 = arith.addf %32, %31 : vector<8x32xf32>
    %34 = arith.divf %32, %33 : vector<8x32xf32>
    %35 = vector.extract_strided_slice %22 {offsets = [0, 64], sizes = [8, 32], strides = [1, 1]} : vector<8x128xf32> to vector<8x32xf32>
    %36 = math.tanh %35 : vector<8x32xf32>
    %37 = vector.extract_strided_slice %22 {offsets = [0, 96], sizes = [8, 32], strides = [1, 1]} : vector<8x128xf32> to vector<8x32xf32>
    %38 = arith.negf %37 : vector<8x32xf32>
    %39 = math.exp %38 : vector<8x32xf32>
    %cst_20 = arith.constant 1.000000e+00 : f32
    %40 = vector.broadcast %cst_20 : f32 to vector<8x32xf32>
    %41 = arith.addf %40, %39 : vector<8x32xf32>
    %42 = arith.divf %40, %41 : vector<8x32xf32>
    %43 = arith.mulf %34, %19 : vector<8x32xf32>
    %44 = arith.mulf %28, %36 : vector<8x32xf32>
    %45 = arith.addf %43, %44 : vector<8x32xf32>
    %46 = math.tanh %45 : vector<8x32xf32>
    %47 = arith.mulf %42, %46 : vector<8x32xf32>
    %cst_21 = arith.constant dense<0.000000e+00> : vector<8x128xf32>
    %48 = tpu.matmul %47, %14, %cst_21 {dimension_numbers = #tpu.dot_dimension_numbers<[1], [0], [0], [1], [0, 0, 1, 1], [], []>} : vector<8x32xf32>, vector<32x128xf32>, vector<8x128xf32> -> vector<8x128xf32>
    %cst_22 = arith.constant dense<0.000000e+00> : vector<8x128xf32>
    %49 = tpu.matmul %19, %15, %cst_22 {dimension_numbers = #tpu.dot_dimension_numbers<[1], [0], [0], [1], [0, 0, 1, 1], [], []>} : vector<8x32xf32>, vector<32x128xf32>, vector<8x128xf32> -> vector<8x128xf32>
    %50 = arith.addf %48, %49 : vector<8x128xf32>
    %51 = arith.addf %50, %18 : vector<8x128xf32>
    %52 = vector.extract_strided_slice %51 {offsets = [0, 0], sizes = [8, 32], strides = [1, 1]} : vector<8x128xf32> to vector<8x32xf32>
    %53 = arith.negf %52 : vector<8x32xf32>
    %54 = math.exp %53 : vector<8x32xf32>
    %cst_23 = arith.constant 1.000000e+00 : f32
    %55 = vector.broadcast %cst_23 : f32 to vector<8x32xf32>
    %56 = arith.addf %55, %54 : vector<8x32xf32>
    %57 = arith.divf %55, %56 : vector<8x32xf32>
    %58 = vector.extract_strided_slice %51 {offsets = [0, 32], sizes = [8, 32], strides = [1, 1]} : vector<8x128xf32> to vector<8x32xf32>
    %59 = arith.negf %58 : vector<8x32xf32>
    %60 = math.exp %59 : vector<8x32xf32>
    %cst_24 = arith.constant 1.000000e+00 : f32
    %61 = vector.broadcast %cst_24 : f32 to vector<8x32xf32>
    %62 = arith.addf %61, %60 : vector<8x32xf32>
    %63 = arith.divf %61, %62 : vector<8x32xf32>
    %64 = vector.extract_strided_slice %51 {offsets = [0, 64], sizes = [8, 32], strides = [1, 1]} : vector<8x128xf32> to vector<8x32xf32>
    %65 = math.tanh %64 : vector<8x32xf32>
    %66 = vector.extract_strided_slice %51 {offsets = [0, 96], sizes = [8, 32], strides = [1, 1]} : vector<8x128xf32> to vector<8x32xf32>
    %67 = arith.negf %66 : vector<8x32xf32>
    %68 = math.exp %67 : vector<8x32xf32>
    %cst_25 = arith.constant 1.000000e+00 : f32
    %69 = vector.broadcast %cst_25 : f32 to vector<8x32xf32>
    %70 = arith.addf %69, %68 : vector<8x32xf32>
    %71 = arith.divf %69, %70 : vector<8x32xf32>
    %72 = arith.mulf %63, %19 : vector<8x32xf32>
    %73 = arith.mulf %57, %65 : vector<8x32xf32>
    %74 = arith.addf %72, %73 : vector<8x32xf32>
    %75 = math.tanh %74 : vector<8x32xf32>
    %76 = arith.mulf %71, %75 : vector<8x32xf32>
    %77 = vector.extract_strided_slice %13 {offsets = [8, 0], sizes = [8, 128], strides = [1, 1]} : vector<48x128xf32> to vector<8x128xf32>
    %cst_26 = arith.constant dense<0.000000e+00> : vector<8x128xf32>
    %78 = tpu.matmul %47, %7, %cst_26 {dimension_numbers = #tpu.dot_dimension_numbers<[1], [0], [0], [1], [0, 0, 1, 1], [], []>} : vector<8x32xf32>, vector<32x128xf32>, vector<8x128xf32> -> vector<8x128xf32>
    %79 = arith.addf %77, %78 : vector<8x128xf32>
    %80 = vector.extract_strided_slice %79 {offsets = [0, 0], sizes = [8, 32], strides = [1, 1]} : vector<8x128xf32> to vector<8x32xf32>
    %81 = arith.negf %80 : vector<8x32xf32>
    %82 = math.exp %81 : vector<8x32xf32>
    %cst_27 = arith.constant 1.000000e+00 : f32
    %83 = vector.broadcast %cst_27 : f32 to vector<8x32xf32>
    %84 = arith.addf %83, %82 : vector<8x32xf32>
    %85 = arith.divf %83, %84 : vector<8x32xf32>
    %86 = vector.extract_strided_slice %79 {offsets = [0, 32], sizes = [8, 32], strides = [1, 1]} : vector<8x128xf32> to vector<8x32xf32>
    %87 = arith.negf %86 : vector<8x32xf32>
    %88 = math.exp %87 : vector<8x32xf32>
    %cst_28 = arith.constant 1.000000e+00 : f32
    %89 = vector.broadcast %cst_28 : f32 to vector<8x32xf32>
    %90 = arith.addf %89, %88 : vector<8x32xf32>
    %91 = arith.divf %89, %90 : vector<8x32xf32>
    %92 = vector.extract_strided_slice %79 {offsets = [0, 64], sizes = [8, 32], strides = [1, 1]} : vector<8x128xf32> to vector<8x32xf32>
    %93 = math.tanh %92 : vector<8x32xf32>
    %94 = vector.extract_strided_slice %79 {offsets = [0, 96], sizes = [8, 32], strides = [1, 1]} : vector<8x128xf32> to vector<8x32xf32>
    %95 = arith.negf %94 : vector<8x32xf32>
    %96 = math.exp %95 : vector<8x32xf32>
    %cst_29 = arith.constant 1.000000e+00 : f32
    %97 = vector.broadcast %cst_29 : f32 to vector<8x32xf32>
    %98 = arith.addf %97, %96 : vector<8x32xf32>
    %99 = arith.divf %97, %98 : vector<8x32xf32>
    %100 = arith.mulf %91, %45 : vector<8x32xf32>
    %101 = arith.mulf %85, %93 : vector<8x32xf32>
    %102 = arith.addf %100, %101 : vector<8x32xf32>
    %103 = math.tanh %102 : vector<8x32xf32>
    %104 = arith.mulf %99, %103 : vector<8x32xf32>
    %cst_30 = arith.constant dense<0.000000e+00> : vector<8x128xf32>
    %105 = tpu.matmul %104, %14, %cst_30 {dimension_numbers = #tpu.dot_dimension_numbers<[1], [0], [0], [1], [0, 0, 1, 1], [], []>} : vector<8x32xf32>, vector<32x128xf32>, vector<8x128xf32> -> vector<8x128xf32>
    %cst_31 = arith.constant dense<0.000000e+00> : vector<8x128xf32>
    %106 = tpu.matmul %76, %15, %cst_31 {dimension_numbers = #tpu.dot_dimension_numbers<[1], [0], [0], [1], [0, 0, 1, 1], [], []>} : vector<8x32xf32>, vector<32x128xf32>, vector<8x128xf32> -> vector<8x128xf32>
    %107 = arith.addf %105, %106 : vector<8x128xf32>
    %108 = arith.addf %107, %18 : vector<8x128xf32>
    %109 = vector.extract_strided_slice %108 {offsets = [0, 0], sizes = [8, 32], strides = [1, 1]} : vector<8x128xf32> to vector<8x32xf32>
    %110 = arith.negf %109 : vector<8x32xf32>
    %111 = math.exp %110 : vector<8x32xf32>
    %cst_32 = arith.constant 1.000000e+00 : f32
    %112 = vector.broadcast %cst_32 : f32 to vector<8x32xf32>
    %113 = arith.addf %112, %111 : vector<8x32xf32>
    %114 = arith.divf %112, %113 : vector<8x32xf32>
    %115 = vector.extract_strided_slice %108 {offsets = [0, 32], sizes = [8, 32], strides = [1, 1]} : vector<8x128xf32> to vector<8x32xf32>
    %116 = arith.negf %115 : vector<8x32xf32>
    %117 = math.exp %116 : vector<8x32xf32>
    %cst_33 = arith.constant 1.000000e+00 : f32
    %118 = vector.broadcast %cst_33 : f32 to vector<8x32xf32>
    %119 = arith.addf %118, %117 : vector<8x32xf32>
    %120 = arith.divf %118, %119 : vector<8x32xf32>
    %121 = vector.extract_strided_slice %108 {offsets = [0, 64], sizes = [8, 32], strides = [1, 1]} : vector<8x128xf32> to vector<8x32xf32>
    %122 = math.tanh %121 : vector<8x32xf32>
    %123 = vector.extract_strided_slice %108 {offsets = [0, 96], sizes = [8, 32], strides = [1, 1]} : vector<8x128xf32> to vector<8x32xf32>
    %124 = arith.negf %123 : vector<8x32xf32>
    %125 = math.exp %124 : vector<8x32xf32>
    %cst_34 = arith.constant 1.000000e+00 : f32
    %126 = vector.broadcast %cst_34 : f32 to vector<8x32xf32>
    %127 = arith.addf %126, %125 : vector<8x32xf32>
    %128 = arith.divf %126, %127 : vector<8x32xf32>
    %129 = arith.mulf %120, %74 : vector<8x32xf32>
    %130 = arith.mulf %114, %122 : vector<8x32xf32>
    %131 = arith.addf %129, %130 : vector<8x32xf32>
    %132 = math.tanh %131 : vector<8x32xf32>
    %133 = arith.mulf %128, %132 : vector<8x32xf32>
    %134 = vector.extract_strided_slice %13 {offsets = [16, 0], sizes = [8, 128], strides = [1, 1]} : vector<48x128xf32> to vector<8x128xf32>
    %cst_35 = arith.constant dense<0.000000e+00> : vector<8x128xf32>
    %135 = tpu.matmul %104, %7, %cst_35 {dimension_numbers = #tpu.dot_dimension_numbers<[1], [0], [0], [1], [0, 0, 1, 1], [], []>} : vector<8x32xf32>, vector<32x128xf32>, vector<8x128xf32> -> vector<8x128xf32>
    %136 = arith.addf %134, %135 : vector<8x128xf32>
    %137 = vector.extract_strided_slice %136 {offsets = [0, 0], sizes = [8, 32], strides = [1, 1]} : vector<8x128xf32> to vector<8x32xf32>
    %138 = arith.negf %137 : vector<8x32xf32>
    %139 = math.exp %138 : vector<8x32xf32>
    %cst_36 = arith.constant 1.000000e+00 : f32
    %140 = vector.broadcast %cst_36 : f32 to vector<8x32xf32>
    %141 = arith.addf %140, %139 : vector<8x32xf32>
    %142 = arith.divf %140, %141 : vector<8x32xf32>
    %143 = vector.extract_strided_slice %136 {offsets = [0, 32], sizes = [8, 32], strides = [1, 1]} : vector<8x128xf32> to vector<8x32xf32>
    %144 = arith.negf %143 : vector<8x32xf32>
    %145 = math.exp %144 : vector<8x32xf32>
    %cst_37 = arith.constant 1.000000e+00 : f32
    %146 = vector.broadcast %cst_37 : f32 to vector<8x32xf32>
    %147 = arith.addf %146, %145 : vector<8x32xf32>
    %148 = arith.divf %146, %147 : vector<8x32xf32>
    %149 = vector.extract_strided_slice %136 {offsets = [0, 64], sizes = [8, 32], strides = [1, 1]} : vector<8x128xf32> to vector<8x32xf32>
    %150 = math.tanh %149 : vector<8x32xf32>
    %151 = vector.extract_strided_slice %136 {offsets = [0, 96], sizes = [8, 32], strides = [1, 1]} : vector<8x128xf32> to vector<8x32xf32>
    %152 = arith.negf %151 : vector<8x32xf32>
    %153 = math.exp %152 : vector<8x32xf32>
    %cst_38 = arith.constant 1.000000e+00 : f32
    %154 = vector.broadcast %cst_38 : f32 to vector<8x32xf32>
    %155 = arith.addf %154, %153 : vector<8x32xf32>
    %156 = arith.divf %154, %155 : vector<8x32xf32>
    %157 = arith.mulf %148, %102 : vector<8x32xf32>
    %158 = arith.mulf %142, %150 : vector<8x32xf32>
    %159 = arith.addf %157, %158 : vector<8x32xf32>
    %160 = math.tanh %159 : vector<8x32xf32>
    %161 = arith.mulf %156, %160 : vector<8x32xf32>
    %cst_39 = arith.constant dense<0.000000e+00> : vector<8x128xf32>
    %162 = tpu.matmul %161, %14, %cst_39 {dimension_numbers = #tpu.dot_dimension_numbers<[1], [0], [0], [1], [0, 0, 1, 1], [], []>} : vector<8x32xf32>, vector<32x128xf32>, vector<8x128xf32> -> vector<8x128xf32>
    %cst_40 = arith.constant dense<0.000000e+00> : vector<8x128xf32>
    %163 = tpu.matmul %133, %15, %cst_40 {dimension_numbers = #tpu.dot_dimension_numbers<[1], [0], [0], [1], [0, 0, 1, 1], [], []>} : vector<8x32xf32>, vector<32x128xf32>, vector<8x128xf32> -> vector<8x128xf32>
    %164 = arith.addf %162, %163 : vector<8x128xf32>
    %165 = arith.addf %164, %18 : vector<8x128xf32>
    %166 = vector.extract_strided_slice %165 {offsets = [0, 0], sizes = [8, 32], strides = [1, 1]} : vector<8x128xf32> to vector<8x32xf32>
    %167 = arith.negf %166 : vector<8x32xf32>
    %168 = math.exp %167 : vector<8x32xf32>
    %cst_41 = arith.constant 1.000000e+00 : f32
    %169 = vector.broadcast %cst_41 : f32 to vector<8x32xf32>
    %170 = arith.addf %169, %168 : vector<8x32xf32>
    %171 = arith.divf %169, %170 : vector<8x32xf32>
    %172 = vector.extract_strided_slice %165 {offsets = [0, 32], sizes = [8, 32], strides = [1, 1]} : vector<8x128xf32> to vector<8x32xf32>
    %173 = arith.negf %172 : vector<8x32xf32>
    %174 = math.exp %173 : vector<8x32xf32>
    %cst_42 = arith.constant 1.000000e+00 : f32
    %175 = vector.broadcast %cst_42 : f32 to vector<8x32xf32>
    %176 = arith.addf %175, %174 : vector<8x32xf32>
    %177 = arith.divf %175, %176 : vector<8x32xf32>
    %178 = vector.extract_strided_slice %165 {offsets = [0, 64], sizes = [8, 32], strides = [1, 1]} : vector<8x128xf32> to vector<8x32xf32>
    %179 = math.tanh %178 : vector<8x32xf32>
    %180 = vector.extract_strided_slice %165 {offsets = [0, 96], sizes = [8, 32], strides = [1, 1]} : vector<8x128xf32> to vector<8x32xf32>
    %181 = arith.negf %180 : vector<8x32xf32>
    %182 = math.exp %181 : vector<8x32xf32>
    %cst_43 = arith.constant 1.000000e+00 : f32
    %183 = vector.broadcast %cst_43 : f32 to vector<8x32xf32>
    %184 = arith.addf %183, %182 : vector<8x32xf32>
    %185 = arith.divf %183, %184 : vector<8x32xf32>
    %186 = arith.mulf %177, %131 : vector<8x32xf32>
    %187 = arith.mulf %171, %179 : vector<8x32xf32>
    %188 = arith.addf %186, %187 : vector<8x32xf32>
    %189 = math.tanh %188 : vector<8x32xf32>
    %190 = arith.mulf %185, %189 : vector<8x32xf32>
    %191 = vector.extract_strided_slice %13 {offsets = [24, 0], sizes = [8, 128], strides = [1, 1]} : vector<48x128xf32> to vector<8x128xf32>
    %cst_44 = arith.constant dense<0.000000e+00> : vector<8x128xf32>
    %192 = tpu.matmul %161, %7, %cst_44 {dimension_numbers = #tpu.dot_dimension_numbers<[1], [0], [0], [1], [0, 0, 1, 1], [], []>} : vector<8x32xf32>, vector<32x128xf32>, vector<8x128xf32> -> vector<8x128xf32>
    %193 = arith.addf %191, %192 : vector<8x128xf32>
    %194 = vector.extract_strided_slice %193 {offsets = [0, 0], sizes = [8, 32], strides = [1, 1]} : vector<8x128xf32> to vector<8x32xf32>
    %195 = arith.negf %194 : vector<8x32xf32>
    %196 = math.exp %195 : vector<8x32xf32>
    %cst_45 = arith.constant 1.000000e+00 : f32
    %197 = vector.broadcast %cst_45 : f32 to vector<8x32xf32>
    %198 = arith.addf %197, %196 : vector<8x32xf32>
    %199 = arith.divf %197, %198 : vector<8x32xf32>
    %200 = vector.extract_strided_slice %193 {offsets = [0, 32], sizes = [8, 32], strides = [1, 1]} : vector<8x128xf32> to vector<8x32xf32>
    %201 = arith.negf %200 : vector<8x32xf32>
    %202 = math.exp %201 : vector<8x32xf32>
    %cst_46 = arith.constant 1.000000e+00 : f32
    %203 = vector.broadcast %cst_46 : f32 to vector<8x32xf32>
    %204 = arith.addf %203, %202 : vector<8x32xf32>
    %205 = arith.divf %203, %204 : vector<8x32xf32>
    %206 = vector.extract_strided_slice %193 {offsets = [0, 64], sizes = [8, 32], strides = [1, 1]} : vector<8x128xf32> to vector<8x32xf32>
    %207 = math.tanh %206 : vector<8x32xf32>
    %208 = vector.extract_strided_slice %193 {offsets = [0, 96], sizes = [8, 32], strides = [1, 1]} : vector<8x128xf32> to vector<8x32xf32>
    %209 = arith.negf %208 : vector<8x32xf32>
    %210 = math.exp %209 : vector<8x32xf32>
    %cst_47 = arith.constant 1.000000e+00 : f32
    %211 = vector.broadcast %cst_47 : f32 to vector<8x32xf32>
    %212 = arith.addf %211, %210 : vector<8x32xf32>
    %213 = arith.divf %211, %212 : vector<8x32xf32>
    %214 = arith.mulf %205, %159 : vector<8x32xf32>
    %215 = arith.mulf %199, %207 : vector<8x32xf32>
    %216 = arith.addf %214, %215 : vector<8x32xf32>
    %217 = math.tanh %216 : vector<8x32xf32>
    %218 = arith.mulf %213, %217 : vector<8x32xf32>
    %cst_48 = arith.constant dense<0.000000e+00> : vector<8x128xf32>
    %219 = tpu.matmul %218, %14, %cst_48 {dimension_numbers = #tpu.dot_dimension_numbers<[1], [0], [0], [1], [0, 0, 1, 1], [], []>} : vector<8x32xf32>, vector<32x128xf32>, vector<8x128xf32> -> vector<8x128xf32>
    %cst_49 = arith.constant dense<0.000000e+00> : vector<8x128xf32>
    %220 = tpu.matmul %190, %15, %cst_49 {dimension_numbers = #tpu.dot_dimension_numbers<[1], [0], [0], [1], [0, 0, 1, 1], [], []>} : vector<8x32xf32>, vector<32x128xf32>, vector<8x128xf32> -> vector<8x128xf32>
    %221 = arith.addf %219, %220 : vector<8x128xf32>
    %222 = arith.addf %221, %18 : vector<8x128xf32>
    %223 = vector.extract_strided_slice %222 {offsets = [0, 0], sizes = [8, 32], strides = [1, 1]} : vector<8x128xf32> to vector<8x32xf32>
    %224 = arith.negf %223 : vector<8x32xf32>
    %225 = math.exp %224 : vector<8x32xf32>
    %cst_50 = arith.constant 1.000000e+00 : f32
    %226 = vector.broadcast %cst_50 : f32 to vector<8x32xf32>
    %227 = arith.addf %226, %225 : vector<8x32xf32>
    %228 = arith.divf %226, %227 : vector<8x32xf32>
    %229 = vector.extract_strided_slice %222 {offsets = [0, 32], sizes = [8, 32], strides = [1, 1]} : vector<8x128xf32> to vector<8x32xf32>
    %230 = arith.negf %229 : vector<8x32xf32>
    %231 = math.exp %230 : vector<8x32xf32>
    %cst_51 = arith.constant 1.000000e+00 : f32
    %232 = vector.broadcast %cst_51 : f32 to vector<8x32xf32>
    %233 = arith.addf %232, %231 : vector<8x32xf32>
    %234 = arith.divf %232, %233 : vector<8x32xf32>
    %235 = vector.extract_strided_slice %222 {offsets = [0, 64], sizes = [8, 32], strides = [1, 1]} : vector<8x128xf32> to vector<8x32xf32>
    %236 = math.tanh %235 : vector<8x32xf32>
    %237 = vector.extract_strided_slice %222 {offsets = [0, 96], sizes = [8, 32], strides = [1, 1]} : vector<8x128xf32> to vector<8x32xf32>
    %238 = arith.negf %237 : vector<8x32xf32>
    %239 = math.exp %238 : vector<8x32xf32>
    %cst_52 = arith.constant 1.000000e+00 : f32
    %240 = vector.broadcast %cst_52 : f32 to vector<8x32xf32>
    %241 = arith.addf %240, %239 : vector<8x32xf32>
    %242 = arith.divf %240, %241 : vector<8x32xf32>
    %243 = arith.mulf %234, %188 : vector<8x32xf32>
    %244 = arith.mulf %228, %236 : vector<8x32xf32>
    %245 = arith.addf %243, %244 : vector<8x32xf32>
    %246 = math.tanh %245 : vector<8x32xf32>
    %247 = arith.mulf %242, %246 : vector<8x32xf32>
    %248 = vector.extract_strided_slice %13 {offsets = [32, 0], sizes = [8, 128], strides = [1, 1]} : vector<48x128xf32> to vector<8x128xf32>
    %cst_53 = arith.constant dense<0.000000e+00> : vector<8x128xf32>
    %249 = tpu.matmul %218, %7, %cst_53 {dimension_numbers = #tpu.dot_dimension_numbers<[1], [0], [0], [1], [0, 0, 1, 1], [], []>} : vector<8x32xf32>, vector<32x128xf32>, vector<8x128xf32> -> vector<8x128xf32>
    %250 = arith.addf %248, %249 : vector<8x128xf32>
    %251 = vector.extract_strided_slice %250 {offsets = [0, 0], sizes = [8, 32], strides = [1, 1]} : vector<8x128xf32> to vector<8x32xf32>
    %252 = arith.negf %251 : vector<8x32xf32>
    %253 = math.exp %252 : vector<8x32xf32>
    %cst_54 = arith.constant 1.000000e+00 : f32
    %254 = vector.broadcast %cst_54 : f32 to vector<8x32xf32>
    %255 = arith.addf %254, %253 : vector<8x32xf32>
    %256 = arith.divf %254, %255 : vector<8x32xf32>
    %257 = vector.extract_strided_slice %250 {offsets = [0, 32], sizes = [8, 32], strides = [1, 1]} : vector<8x128xf32> to vector<8x32xf32>
    %258 = arith.negf %257 : vector<8x32xf32>
    %259 = math.exp %258 : vector<8x32xf32>
    %cst_55 = arith.constant 1.000000e+00 : f32
    %260 = vector.broadcast %cst_55 : f32 to vector<8x32xf32>
    %261 = arith.addf %260, %259 : vector<8x32xf32>
    %262 = arith.divf %260, %261 : vector<8x32xf32>
    %263 = vector.extract_strided_slice %250 {offsets = [0, 64], sizes = [8, 32], strides = [1, 1]} : vector<8x128xf32> to vector<8x32xf32>
    %264 = math.tanh %263 : vector<8x32xf32>
    %265 = vector.extract_strided_slice %250 {offsets = [0, 96], sizes = [8, 32], strides = [1, 1]} : vector<8x128xf32> to vector<8x32xf32>
    %266 = arith.negf %265 : vector<8x32xf32>
    %267 = math.exp %266 : vector<8x32xf32>
    %cst_56 = arith.constant 1.000000e+00 : f32
    %268 = vector.broadcast %cst_56 : f32 to vector<8x32xf32>
    %269 = arith.addf %268, %267 : vector<8x32xf32>
    %270 = arith.divf %268, %269 : vector<8x32xf32>
    %271 = arith.mulf %262, %216 : vector<8x32xf32>
    %272 = arith.mulf %256, %264 : vector<8x32xf32>
    %273 = arith.addf %271, %272 : vector<8x32xf32>
    %274 = math.tanh %273 : vector<8x32xf32>
    %275 = arith.mulf %270, %274 : vector<8x32xf32>
    %cst_57 = arith.constant dense<0.000000e+00> : vector<8x128xf32>
    %276 = tpu.matmul %275, %14, %cst_57 {dimension_numbers = #tpu.dot_dimension_numbers<[1], [0], [0], [1], [0, 0, 1, 1], [], []>} : vector<8x32xf32>, vector<32x128xf32>, vector<8x128xf32> -> vector<8x128xf32>
    %cst_58 = arith.constant dense<0.000000e+00> : vector<8x128xf32>
    %277 = tpu.matmul %247, %15, %cst_58 {dimension_numbers = #tpu.dot_dimension_numbers<[1], [0], [0], [1], [0, 0, 1, 1], [], []>} : vector<8x32xf32>, vector<32x128xf32>, vector<8x128xf32> -> vector<8x128xf32>
    %278 = arith.addf %276, %277 : vector<8x128xf32>
    %279 = arith.addf %278, %18 : vector<8x128xf32>
    %280 = vector.extract_strided_slice %279 {offsets = [0, 0], sizes = [8, 32], strides = [1, 1]} : vector<8x128xf32> to vector<8x32xf32>
    %281 = arith.negf %280 : vector<8x32xf32>
    %282 = math.exp %281 : vector<8x32xf32>
    %cst_59 = arith.constant 1.000000e+00 : f32
    %283 = vector.broadcast %cst_59 : f32 to vector<8x32xf32>
    %284 = arith.addf %283, %282 : vector<8x32xf32>
    %285 = arith.divf %283, %284 : vector<8x32xf32>
    %286 = vector.extract_strided_slice %279 {offsets = [0, 32], sizes = [8, 32], strides = [1, 1]} : vector<8x128xf32> to vector<8x32xf32>
    %287 = arith.negf %286 : vector<8x32xf32>
    %288 = math.exp %287 : vector<8x32xf32>
    %cst_60 = arith.constant 1.000000e+00 : f32
    %289 = vector.broadcast %cst_60 : f32 to vector<8x32xf32>
    %290 = arith.addf %289, %288 : vector<8x32xf32>
    %291 = arith.divf %289, %290 : vector<8x32xf32>
    %292 = vector.extract_strided_slice %279 {offsets = [0, 64], sizes = [8, 32], strides = [1, 1]} : vector<8x128xf32> to vector<8x32xf32>
    %293 = math.tanh %292 : vector<8x32xf32>
    %294 = vector.extract_strided_slice %279 {offsets = [0, 96], sizes = [8, 32], strides = [1, 1]} : vector<8x128xf32> to vector<8x32xf32>
    %295 = arith.negf %294 : vector<8x32xf32>
    %296 = math.exp %295 : vector<8x32xf32>
    %cst_61 = arith.constant 1.000000e+00 : f32
    %297 = vector.broadcast %cst_61 : f32 to vector<8x32xf32>
    %298 = arith.addf %297, %296 : vector<8x32xf32>
    %299 = arith.divf %297, %298 : vector<8x32xf32>
    %300 = arith.mulf %291, %245 : vector<8x32xf32>
    %301 = arith.mulf %285, %293 : vector<8x32xf32>
    %302 = arith.addf %300, %301 : vector<8x32xf32>
    %303 = math.tanh %302 : vector<8x32xf32>
    %304 = arith.mulf %299, %303 : vector<8x32xf32>
    %305 = vector.extract_strided_slice %13 {offsets = [40, 0], sizes = [8, 128], strides = [1, 1]} : vector<48x128xf32> to vector<8x128xf32>
    %cst_62 = arith.constant dense<0.000000e+00> : vector<8x128xf32>
    %306 = tpu.matmul %275, %7, %cst_62 {dimension_numbers = #tpu.dot_dimension_numbers<[1], [0], [0], [1], [0, 0, 1, 1], [], []>} : vector<8x32xf32>, vector<32x128xf32>, vector<8x128xf32> -> vector<8x128xf32>
    %307 = arith.addf %305, %306 : vector<8x128xf32>
    %308 = vector.extract_strided_slice %307 {offsets = [0, 0], sizes = [8, 32], strides = [1, 1]} : vector<8x128xf32> to vector<8x32xf32>
    %309 = arith.negf %308 : vector<8x32xf32>
    %310 = math.exp %309 : vector<8x32xf32>
    %cst_63 = arith.constant 1.000000e+00 : f32
    %311 = vector.broadcast %cst_63 : f32 to vector<8x32xf32>
    %312 = arith.addf %311, %310 : vector<8x32xf32>
    %313 = arith.divf %311, %312 : vector<8x32xf32>
    %314 = vector.extract_strided_slice %307 {offsets = [0, 32], sizes = [8, 32], strides = [1, 1]} : vector<8x128xf32> to vector<8x32xf32>
    %315 = arith.negf %314 : vector<8x32xf32>
    %316 = math.exp %315 : vector<8x32xf32>
    %cst_64 = arith.constant 1.000000e+00 : f32
    %317 = vector.broadcast %cst_64 : f32 to vector<8x32xf32>
    %318 = arith.addf %317, %316 : vector<8x32xf32>
    %319 = arith.divf %317, %318 : vector<8x32xf32>
    %320 = vector.extract_strided_slice %307 {offsets = [0, 64], sizes = [8, 32], strides = [1, 1]} : vector<8x128xf32> to vector<8x32xf32>
    %321 = math.tanh %320 : vector<8x32xf32>
    %322 = vector.extract_strided_slice %307 {offsets = [0, 96], sizes = [8, 32], strides = [1, 1]} : vector<8x128xf32> to vector<8x32xf32>
    %323 = arith.negf %322 : vector<8x32xf32>
    %324 = math.exp %323 : vector<8x32xf32>
    %cst_65 = arith.constant 1.000000e+00 : f32
    %325 = vector.broadcast %cst_65 : f32 to vector<8x32xf32>
    %326 = arith.addf %325, %324 : vector<8x32xf32>
    %327 = arith.divf %325, %326 : vector<8x32xf32>
    %328 = arith.mulf %319, %273 : vector<8x32xf32>
    %329 = arith.mulf %313, %321 : vector<8x32xf32>
    %330 = arith.addf %328, %329 : vector<8x32xf32>
    %331 = math.tanh %330 : vector<8x32xf32>
    %332 = arith.mulf %327, %331 : vector<8x32xf32>
    %cst_66 = arith.constant dense<0.000000e+00> : vector<8x128xf32>
    %333 = tpu.matmul %332, %14, %cst_66 {dimension_numbers = #tpu.dot_dimension_numbers<[1], [0], [0], [1], [0, 0, 1, 1], [], []>} : vector<8x32xf32>, vector<32x128xf32>, vector<8x128xf32> -> vector<8x128xf32>
    %cst_67 = arith.constant dense<0.000000e+00> : vector<8x128xf32>
    %334 = tpu.matmul %304, %15, %cst_67 {dimension_numbers = #tpu.dot_dimension_numbers<[1], [0], [0], [1], [0, 0, 1, 1], [], []>} : vector<8x32xf32>, vector<32x128xf32>, vector<8x128xf32> -> vector<8x128xf32>
    %335 = arith.addf %333, %334 : vector<8x128xf32>
    %336 = arith.addf %335, %18 : vector<8x128xf32>
    %337 = vector.extract_strided_slice %336 {offsets = [0, 0], sizes = [8, 32], strides = [1, 1]} : vector<8x128xf32> to vector<8x32xf32>
    %338 = arith.negf %337 : vector<8x32xf32>
    %339 = math.exp %338 : vector<8x32xf32>
    %cst_68 = arith.constant 1.000000e+00 : f32
    %340 = vector.broadcast %cst_68 : f32 to vector<8x32xf32>
    %341 = arith.addf %340, %339 : vector<8x32xf32>
    %342 = arith.divf %340, %341 : vector<8x32xf32>
    %343 = vector.extract_strided_slice %336 {offsets = [0, 32], sizes = [8, 32], strides = [1, 1]} : vector<8x128xf32> to vector<8x32xf32>
    %344 = arith.negf %343 : vector<8x32xf32>
    %345 = math.exp %344 : vector<8x32xf32>
    %cst_69 = arith.constant 1.000000e+00 : f32
    %346 = vector.broadcast %cst_69 : f32 to vector<8x32xf32>
    %347 = arith.addf %346, %345 : vector<8x32xf32>
    %348 = arith.divf %346, %347 : vector<8x32xf32>
    %349 = vector.extract_strided_slice %336 {offsets = [0, 64], sizes = [8, 32], strides = [1, 1]} : vector<8x128xf32> to vector<8x32xf32>
    %350 = math.tanh %349 : vector<8x32xf32>
    %351 = vector.extract_strided_slice %336 {offsets = [0, 96], sizes = [8, 32], strides = [1, 1]} : vector<8x128xf32> to vector<8x32xf32>
    %352 = arith.negf %351 : vector<8x32xf32>
    %353 = math.exp %352 : vector<8x32xf32>
    %cst_70 = arith.constant 1.000000e+00 : f32
    %354 = vector.broadcast %cst_70 : f32 to vector<8x32xf32>
    %355 = arith.addf %354, %353 : vector<8x32xf32>
    %356 = arith.divf %354, %355 : vector<8x32xf32>
    %357 = arith.mulf %348, %302 : vector<8x32xf32>
    %358 = arith.mulf %342, %350 : vector<8x32xf32>
    %359 = arith.addf %357, %358 : vector<8x32xf32>
    %360 = math.tanh %359 : vector<8x32xf32>
    %361 = arith.mulf %356, %360 : vector<8x32xf32>
    %c0_71 = arith.constant 0 : index
    %c0_72 = arith.constant 0 : index
    %c0_73 = arith.constant 0 : index
    %362 = vector.load %arg8[%c0_71, %c0_72, %c0_73] : memref<2x8x32xf32, #tpu.memory_space<vmem>>, vector<1x8x32xf32>
    %363 = vector.shape_cast %362 : vector<1x8x32xf32> to vector<8x32xf32>
    %364 = vector.shape_cast %332 : vector<8x32xf32> to vector<1x8x32xf32>
    tpu.vector_store %arg8[%c0_71, %c0_72, %c0_73], %364 {strides = array<i32>} : memref<2x8x32xf32, #tpu.memory_space<vmem>>, vector<1x8x32xf32>,
    %c0_74 = arith.constant 0 : index
    %c0_75 = arith.constant 0 : index
    %c0_76 = arith.constant 0 : index
    %365 = vector.load %arg9[%c0_74, %c0_75, %c0_76] : memref<2x8x32xf32, #tpu.memory_space<vmem>>, vector<1x8x32xf32>
    %366 = vector.shape_cast %365 : vector<1x8x32xf32> to vector<8x32xf32>
    %367 = vector.shape_cast %330 : vector<8x32xf32> to vector<1x8x32xf32>
    tpu.vector_store %arg9[%c0_74, %c0_75, %c0_76], %367 {strides = array<i32>} : memref<2x8x32xf32, #tpu.memory_space<vmem>>, vector<1x8x32xf32>,
    %c1 = arith.constant 1 : index
    %c0_77 = arith.constant 0 : index
    %c0_78 = arith.constant 0 : index
    %368 = vector.load %arg8[%c1, %c0_77, %c0_78] : memref<2x8x32xf32, #tpu.memory_space<vmem>>, vector<1x8x32xf32>
    %369 = vector.shape_cast %368 : vector<1x8x32xf32> to vector<8x32xf32>
    %370 = vector.shape_cast %361 : vector<8x32xf32> to vector<1x8x32xf32>
    tpu.vector_store %arg8[%c1, %c0_77, %c0_78], %370 {strides = array<i32>} : memref<2x8x32xf32, #tpu.memory_space<vmem>>, vector<1x8x32xf32>,
    %c1_79 = arith.constant 1 : index
    %c0_80 = arith.constant 0 : index
    %c0_81 = arith.constant 0 : index
    %371 = vector.load %arg9[%c1_79, %c0_80, %c0_81] : memref<2x8x32xf32, #tpu.memory_space<vmem>>, vector<1x8x32xf32>
    %372 = vector.shape_cast %371 : vector<1x8x32xf32> to vector<8x32xf32>
    %373 = vector.shape_cast %359 : vector<8x32xf32> to vector<1x8x32xf32>
    tpu.vector_store %arg9[%c1_79, %c0_80, %c0_81], %373 {strides = array<i32>} : memref<2x8x32xf32, #tpu.memory_space<vmem>>, vector<1x8x32xf32>,
    return
  }
}

</mosaic_0001>

<llo_original>
// kernel: encoder_forward.1
$region0: #{encoder_forward.1}
  #allocation0 [shape = 'u32[]', space=smem, size = 0x4, offset = 0x4, fixed_abs, tag = 'smem constant byte address 0x4 - core index']
  #allocation1 [shape = 'u32[144,128]{1,0:T(1,128)}', space=vmem, size = 0x12000, scoped, tag = 'internal scratch']
  %s0 = inlined_call_operand.vmem [shape: s32[48,1], index: 0, kind: input, shape index: {}]
  %s1 = inlined_call_operand.vmem [shape: f32[24,16], index: 1, kind: input, shape index: {}]
  %s2 = inlined_call_operand.vmem [shape: f32[16,128], index: 2, kind: input, shape index: {}]
  %s3 = inlined_call_operand.vmem [shape: f32[32,128], index: 3, kind: input, shape index: {}]
  %s4 = inlined_call_operand.vmem [shape: f32[1,128], index: 4, kind: input, shape index: {}]
  %s5 = inlined_call_operand.vmem [shape: f32[32,128], index: 5, kind: input, shape index: {}]
  %s6 = inlined_call_operand.vmem [shape: f32[32,128], index: 6, kind: input, shape index: {}]
  %s7 = inlined_call_operand.vmem [shape: f32[1,128], index: 7, kind: input, shape index: {}]
  %s8 = inlined_call_operand.vmem [shape: f32[2,8,32], index: 8, kind: output, shape index: {0}]
  %s9 = inlined_call_operand.vmem [shape: f32[2,8,32], index: 9, kind: output, shape index: {1}]
  %10 = xla_tuple %s8, %s9
  %s11 = sld [smem:[#allocation0]]
  $region50: #{encoder_forward.1} parent=0
    _
  %s13 = ssub.s32 1, %s11
  %s14 = scalar_select 0, %s13, %s11
  // Predicated region
  $region2: #{encoder_forward.1} parent=0 // pred_check
    _
  $region3: #{encoder_forward.1} parent=0 // pred_check_branch
    %16 = sbr.rel (0) target = $region5
  $region4: #{encoder_forward.1} parent=0 // pred_region
    _
  $region5: #{encoder_forward.1} parent=0 // pred_fallthru
    _
  // Predicated region
  $region6: #{encoder_forward.1} parent=0 // pred_check
    _
  $region7: #{encoder_forward.1} parent=0 // pred_check_branch
    %18 = sbr.rel (0) target = $region9
  $region8: #{encoder_forward.1} parent=0 // pred_region
    _
  $region9: #{encoder_forward.1} parent=0 // pred_fallthru
    _
  // Predicated region
  $region10: #{encoder_forward.1} parent=0 // pred_check
    _
  $region11: #{encoder_forward.1} parent=0 // pred_check_branch
    %20 = sbr.rel (0) target = $region13
  $region12: #{encoder_forward.1} parent=0 // pred_region
    _
  $region13: #{encoder_forward.1} parent=0 // pred_fallthru
    _
  // Predicated region
  $region14: #{encoder_forward.1} parent=0 // pred_check
    _
  $region15: #{encoder_forward.1} parent=0 // pred_check_branch
    %22 = sbr.rel (0) target = $region17
  $region16: #{encoder_forward.1} parent=0 // pred_region
    _
  $region17: #{encoder_forward.1} parent=0 // pred_fallthru
    _
  // Predicated region
  $region18: #{encoder_forward.1} parent=0 // pred_check
    _
  $region19: #{encoder_forward.1} parent=0 // pred_check_branch
    %24 = sbr.rel (0) target = $region21
  $region20: #{encoder_forward.1} parent=0 // pred_region
    _
  $region21: #{encoder_forward.1} parent=0 // pred_fallthru
    _
  // Predicated region
  $region22: #{encoder_forward.1} parent=0 // pred_check
    _
  $region23: #{encoder_forward.1} parent=0 // pred_check_branch
    %26 = sbr.rel (0) target = $region25
  $region24: #{encoder_forward.1} parent=0 // pred_region
    _
  $region25: #{encoder_forward.1} parent=0 // pred_fallthru
    _
  // Predicated region
  $region26: #{encoder_forward.1} parent=0 // pred_check
    _
  $region27: #{encoder_forward.1} parent=0 // pred_check_branch
    %28 = sbr.rel (0) target = $region29
  $region28: #{encoder_forward.1} parent=0 // pred_region
    _
  $region29: #{encoder_forward.1} parent=0 // pred_fallthru
    _
  // Predicated region
  $region30: #{encoder_forward.1} parent=0 // pred_check
    _
  $region31: #{encoder_forward.1} parent=0 // pred_check_branch
    %30 = sbr.rel (0) target = $region33
  $region32: #{encoder_forward.1} parent=0 // pred_region
    _
  $region33: #{encoder_forward.1} parent=0 // pred_fallthru
    _
  %v31 = vld [vmem:[%s0] sm:$0xff]
  %v32 = vld [vmem:[%s0 + $0x8] sm:$0xff]
  %v33 = vld [vmem:[%s0 + $0x10] sm:$0xff]
  %v34 = vld [vmem:[%s0 + $0x18] sm:$0xff]
  %v35 = vld [vmem:[%s0 + $0x20] sm:$0xff]
  %v36 = vld [vmem:[%s0 + $0x28] sm:$0xff]
  %v37 = vlaneseq
  %v38 = vand.u32 %v37, 127
  %39 = vset.pattern.permute.xlu0 0
  %40 = vperm.xlu0 %39, %v31
  %v41 = vpop.permute.xlu0 %40
  %42 = vset.pattern.permute.xlu0 0
  %43 = vperm.xlu0 %42, %v32
  %v44 = vpop.permute.xlu0 %43
  %45 = vset.pattern.permute.xlu0 0
  %46 = vperm.xlu0 %45, %v33
  %v47 = vpop.permute.xlu0 %46
  %48 = vset.pattern.permute.xlu0 0
  %49 = vperm.xlu0 %48, %v34
  %v50 = vpop.permute.xlu0 %49
  %51 = vset.pattern.permute.xlu0 0
  %52 = vperm.xlu0 %51, %v35
  %v53 = vpop.permute.xlu0 %52
  %54 = vset.pattern.permute.xlu0 0
  %55 = vperm.xlu0 %54, %v36
  %v56 = vpop.permute.xlu0 %55
  %vm57 = vcmp.eq.s32.totalorder %v38, %v41
  %vm58 = vcmp.eq.s32.totalorder %v38, %v44
  %vm59 = vcmp.eq.s32.totalorder %v38, %v47
  %vm60 = vcmp.eq.s32.totalorder %v38, %v50
  %vm61 = vcmp.eq.s32.totalorder %v38, %v53
  %vm62 = vcmp.eq.s32.totalorder %v38, %v56
  %v63 = vsel %vm57, 1, 0
  %v64 = vsel %vm58, 1, 0
  %v65 = vsel %vm59, 1, 0
  %v66 = vsel %vm60, 1, 0
  %v67 = vsel %vm61, 1, 0
  %v68 = vsel %vm62, 1, 0
  %v69 = vcvt.s32.f32 %v63
  %v70 = vcvt.s32.f32 %v64
  %v71 = vcvt.s32.f32 %v65
  %v72 = vcvt.s32.f32 %v66
  %v73 = vcvt.s32.f32 %v67
  %v74 = vcvt.s32.f32 %v68
  %v75 = vld [vmem:[%s2] sm:$0xff]
  %v76 = vld [vmem:[%s2 + $0x8] sm:$0xff]
  %v77 = vld [vmem:[%s3] sm:$0xff]
  %v78 = vld [vmem:[%s3 + $0x8] sm:$0xff]
  %v79 = vld [vmem:[%s3 + $0x10] sm:$0xff]
  %v80 = vld [vmem:[%s3 + $0x18] sm:$0xff]
  %v81 = vld [vmem:[%s4] sm:$0x1]
  %v82 = vld [vmem:[%s1] sm:$0xff]
  %v83 = vld [vmem:[%s1 + $0x8] sm:$0xff]
  %v84 = vld [vmem:[%s1 + $0x10] sm:$0xff]
  %vm85 = vcmask 130048
  %v87 = vsel %vm85, %v82, 0
  %v90 = vsel %vm85, %v83, 0
  %v93 = vsel %vm85, %v84, 0
  %95 = vmatprep.subr.mxu0 0.0
  %96 = vmatpush1.msra.mxu0 %v75
  %97 = vmatprep.subr.mxu0 0.0
  %98 = vmatpush1.msra.mxu0 %v76
  %99 = vmatprep.subr.mxu0 0.0
  %100 = vmatpush1.msra.mxu0 0.0
  %101 = vmatprep.subr.mxu0 0.0
  %102 = vmatpush1.msra.mxu0 0.0
  %103 = vmatprep.subr.mxu0 0.0
  %104 = vmatpush1.msra.mxu0 0.0
  %105 = vmatprep.subr.mxu0 0.0
  %106 = vmatpush1.msra.mxu0 0.0
  %107 = vmatprep.subr.mxu0 0.0
  %108 = vmatpush1.msra.mxu0 0.0
  %109 = vmatprep.subr.mxu0 0.0
  %110 = vmatpush1.msra.mxu0 0.0
  %111 = vmatprep.subr.mxu0 0.0
  %112 = vmatpush1.msra.mxu0 0.0
  %113 = vmatprep.subr.mxu0 0.0
  %114 = vmatpush1.msra.mxu0 0.0
  %115 = vmatprep.subr.mxu0 0.0
  %116 = vmatpush1.msra.mxu0 0.0
  %117 = vmatprep.subr.mxu0 0.0
  %118 = vmatpush1.msra.mxu0 0.0
  %119 = vmatprep.subr.mxu0 0.0
  %120 = vmatpush1.msra.mxu0 0.0
  %121 = vmatprep.subr.mxu0 0.0
  %122 = vmatpush1.msra.mxu0 0.0
  %123 = vmatprep.subr.mxu0 0.0
  %124 = vmatpush1.msra.mxu0 0.0
  %125 = vmatprep.subr.mxu0 0.0
  %126 = vmatpush1.msra.mxu0 0.0
  %127 = vmatprep.subr.mxu0 0.0
  %128 = vmatpush1.msra.mxu0 0.0
  %129 = vmatprep.subr.mxu0 0.0
  %130 = vmatpush1.msra.mxu0 0.0
  %131 = vmatprep.subr.mxu0 0.0
  %132 = vmatpush1.msra.mxu0 0.0
  %133 = vmatprep.subr.mxu0 0.0
  %134 = vmatpush1.msra.mxu0 0.0
  %135 = vmatprep.subr.mxu0 0.0
  %136 = vmatpush1.msra.mxu0 0.0
  %137 = vmatprep.subr.mxu0 0.0
  %138 = vmatpush1.msra.mxu0 0.0
  %139 = vmatprep.subr.mxu0 0.0
  %140 = vmatpush1.msra.mxu0 0.0
  %141 = vmatprep.subr.mxu0 0.0
  %142 = vmatpush1.msra.mxu0 0.0
  %143 = vmatprep.subr.mxu0 0.0
  %144 = vmatpush1.msra.mxu0 0.0
  %145 = vmatprep.subr.mxu0 0.0
  %146 = vmatpush1.msra.mxu0 0.0
  %147 = vmatprep.subr.mxu0 0.0
  %148 = vmatpush1.msra.mxu0 0.0
  %149 = vmatprep.subr.mxu0 0.0
  %150 = vmatpush1.msra.mxu0 0.0
  %151 = vmatprep.subr.mxu0 0.0
  %152 = vmatpush1.msra.mxu0 0.0
  %153 = vmatprep.subr.mxu0 0.0
  %154 = vmatpush1.msra.mxu0 0.0
  %155 = vmatprep.subr.mxu0 0.0
  %156 = vmatpush1.msra.mxu0 0.0
  %157 = vmatprep.subr.mxu0 0.0
  %158 = vmatpush1.msra.mxu0 0.0
  %159 = vmatprep.mubr.f32.mxu0 0.0
  %160 = vmatmul.mubr.f32.gmra.mrb[0].mxu0 %v87
  %v161 = vpop.f32.mrb[0].mxu0
  %v162 = vadd.f32 0.0, %v161
  %v163 = vpop.f32.mrb[0].mxu0
  %164 = vmatprep.mubr.f32.mxu0 0.0
  %165 = vmatmul.mubr.f32.gmra.mrb[0].mxu0 %v90
  %v166 = vpop.f32.mrb[0].mxu0
  %v167 = vadd.f32 0.0, %v166
  %v168 = vpop.f32.mrb[0].mxu0
  %169 = vmatprep.mubr.f32.mxu0 0.0
  %170 = vmatmul.mubr.f32.gmra.mrb[0].mxu0 %v93
  %v171 = vpop.f32.mrb[0].mxu0
  %v172 = vadd.f32 0.0, %v171
  %v173 = vpop.f32.mrb[0].mxu0
  %174 = vdwg.mxu0
  %v176 = vlaneseq
  %v177 = vshrl.u32 %v176, 7
  %v178 = vsub.s32 0, %v177
  %v179 = vrot.slane %v81, %v178
  %vm181 = vcmask 195584
  %v183 = vsel %vm181, %v69, 0
  %v186 = vsel %vm181, %v70, 0
  %v189 = vsel %vm181, %v71, 0
  %v192 = vsel %vm181, %v72, 0
  %v195 = vsel %vm181, %v73, 0
  %v198 = vsel %vm181, %v74, 0
  %200 = vmatprep.subr.mxu0 0.0
  %201 = vmatpush1.msra.mxu0 %v162
  %202 = vmatprep.subr.mxu0 0.0
  %203 = vmatpush1.msra.mxu0 %v167
  %204 = vmatprep.subr.mxu0 0.0
  %205 = vmatpush1.msra.mxu0 %v172
  %206 = vmatprep.subr.mxu0 0.0
  %207 = vmatpush1.msra.mxu0 0.0
  %208 = vmatprep.subr.mxu0 0.0
  %209 = vmatpush1.msra.mxu0 0.0
  %210 = vmatprep.subr.mxu0 0.0
  %211 = vmatpush1.msra.mxu0 0.0
  %212 = vmatprep.subr.mxu0 0.0
  %213 = vmatpush1.msra.mxu0 0.0
  %214 = vmatprep.subr.mxu0 0.0
  %215 = vmatpush1.msra.mxu0 0.0
  %216 = vmatprep.subr.mxu0 0.0
  %217 = vmatpush1.msra.mxu0 0.0
  %218 = vmatprep.subr.mxu0 0.0
  %219 = vmatpush1.msra.mxu0 0.0
  %220 = vmatprep.subr.mxu0 0.0
  %221 = vmatpush1.msra.mxu0 0.0
  %222 = vmatprep.subr.mxu0 0.0
  %223 = vmatpush1.msra.mxu0 0.0
  %224 = vmatprep.subr.mxu0 0.0
  %225 = vmatpush1.msra.mxu0 0.0
  %226 = vmatprep.subr.mxu0 0.0
  %227 = vmatpush1.msra.mxu0 0.0
  %228 = vmatprep.subr.mxu0 0.0
  %229 = vmatpush1.msra.mxu0 0.0
  %230 = vmatprep.subr.mxu0 0.0
  %231 = vmatpush1.msra.mxu0 0.0
  %232 = vmatprep.subr.mxu0 0.0
  %233 = vmatpush1.msra.mxu0 0.0
  %234 = vmatprep.subr.mxu0 0.0
  %235 = vmatpush1.msra.mxu0 0.0
  %236 = vmatprep.subr.mxu0 0.0
  %237 = vmatpush1.msra.mxu0 0.0
  %238 = vmatprep.subr.mxu0 0.0
  %239 = vmatpush1.msra.mxu0 0.0
  %240 = vmatprep.subr.mxu0 0.0
  %241 = vmatpush1.msra.mxu0 0.0
  %242 = vmatprep.subr.mxu0 0.0
  %243 = vmatpush1.msra.mxu0 0.0
  %244 = vmatprep.subr.mxu0 0.0
  %245 = vmatpush1.msra.mxu0 0.0
  %246 = vmatprep.subr.mxu0 0.0
  %247 = vmatpush1.msra.mxu0 0.0
  %248 = vmatprep.subr.mxu0 0.0
  %249 = vmatpush1.msra.mxu0 0.0
  %250 = vmatprep.subr.mxu0 0.0
  %251 = vmatpush1.msra.mxu0 0.0
  %252 = vmatprep.subr.mxu0 0.0
  %253 = vmatpush1.msra.mxu0 0.0
  %254 = vmatprep.subr.mxu0 0.0
  %255 = vmatpush1.msra.mxu0 0.0
  %256 = vmatprep.subr.mxu0 0.0
  %257 = vmatpush1.msra.mxu0 0.0
  %258 = vmatprep.subr.mxu0 0.0
  %259 = vmatpush1.msra.mxu0 0.0
  %260 = vmatprep.subr.mxu0 0.0
  %261 = vmatpush1.msra.mxu0 0.0
  %262 = vmatprep.subr.mxu0 0.0
  %263 = vmatpush1.msra.mxu0 0.0
  %264 = vmatprep.mubr.f32.mxu0 0.0
  %265 = vmatmul.mubr.f32.gmra.mrb[0].mxu0 %v183
  %v266 = vpop.f32.mrb[0].mxu0
  %v267 = vadd.f32 %v179, %v266
  %v268 = vpop.f32.mrb[0].mxu0
  %269 = vmatprep.mubr.f32.mxu0 0.0
  %270 = vmatmul.mubr.f32.gmra.mrb[0].mxu0 %v186
  %v271 = vpop.f32.mrb[0].mxu0
  %v272 = vadd.f32 %v179, %v271
  %v273 = vpop.f32.mrb[0].mxu0
  %274 = vmatprep.mubr.f32.mxu0 0.0
  %275 = vmatmul.mubr.f32.gmra.mrb[0].mxu0 %v189
  %v276 = vpop.f32.mrb[0].mxu0
  %v277 = vadd.f32 %v179, %v276
  %v278 = vpop.f32.mrb[0].mxu0
  %279 = vmatprep.mubr.f32.mxu0 0.0
  %280 = vmatmul.mubr.f32.gmra.mrb[0].mxu0 %v192
  %v281 = vpop.f32.mrb[0].mxu0
  %v282 = vadd.f32 %v179, %v281
  %v283 = vpop.f32.mrb[0].mxu0
  %284 = vmatprep.mubr.f32.mxu0 0.0
  %285 = vmatmul.mubr.f32.gmra.mrb[0].mxu0 %v195
  %v286 = vpop.f32.mrb[0].mxu0
  %v287 = vadd.f32 %v179, %v286
  %v288 = vpop.f32.mrb[0].mxu0
  %289 = vmatprep.mubr.f32.mxu0 0.0
  %290 = vmatmul.mubr.f32.gmra.mrb[0].mxu0 %v198
  %v291 = vpop.f32.mrb[0].mxu0
  %v292 = vadd.f32 %v179, %v291
  %v293 = vpop.f32.mrb[0].mxu0
  %294 = vdwg.mxu0
  %v295 = vld [vmem:[%s5] sm:$0xff]
  %v296 = vld [vmem:[%s5 + $0x8] sm:$0xff]
  %v297 = vld [vmem:[%s5 + $0x10] sm:$0xff]
  %v298 = vld [vmem:[%s5 + $0x18] sm:$0xff]
  %v299 = vld [vmem:[%s6] sm:$0xff]
  %v300 = vld [vmem:[%s6 + $0x8] sm:$0xff]
  %v301 = vld [vmem:[%s6 + $0x10] sm:$0xff]
  %v302 = vld [vmem:[%s6 + $0x18] sm:$0xff]
  %v303 = vld [vmem:[%s7] sm:$0x1]
  %v305 = vlaneseq
  %v306 = vshrl.u32 %v305, 7
  %v307 = vsub.s32 0, %v306
  %v308 = vrot.slane %v303, %v307
  %vm310 = vcmask 261120
  %v312 = vsel %vm310, 0.0, 0
  %314 = vmatprep.subr.mxu0 0.0
  %315 = vmatpush1.msra.mxu0 %v77
  %316 = vmatprep.subr.mxu0 0.0
  %317 = vmatpush1.msra.mxu0 %v78
  %318 = vmatprep.subr.mxu0 0.0
  %319 = vmatpush1.msra.mxu0 %v79
  %320 = vmatprep.subr.mxu0 0.0
  %321 = vmatpush1.msra.mxu0 %v80
  %322 = vmatprep.subr.mxu0 0.0
  %323 = vmatpush1.msra.mxu0 0.0
  %324 = vmatprep.subr.mxu0 0.0
  %325 = vmatpush1.msra.mxu0 0.0
  %326 = vmatprep.subr.mxu0 0.0
  %327 = vmatpush1.msra.mxu0 0.0
  %328 = vmatprep.subr.mxu0 0.0
  %329 = vmatpush1.msra.mxu0 0.0
  %330 = vmatprep.subr.mxu0 0.0
  %331 = vmatpush1.msra.mxu0 0.0
  %332 = vmatprep.subr.mxu0 0.0
  %333 = vmatpush1.msra.mxu0 0.0
  %334 = vmatprep.subr.mxu0 0.0
  %335 = vmatpush1.msra.mxu0 0.0
  %336 = vmatprep.subr.mxu0 0.0
  %337 = vmatpush1.msra.mxu0 0.0
  %338 = vmatprep.subr.mxu0 0.0
  %339 = vmatpush1.msra.mxu0 0.0
  %340 = vmatprep.subr.mxu0 0.0
  %341 = vmatpush1.msra.mxu0 0.0
  %342 = vmatprep.subr.mxu0 0.0
  %343 = vmatpush1.msra.mxu0 0.0
  %344 = vmatprep.subr.mxu0 0.0
  %345 = vmatpush1.msra.mxu0 0.0
  %346 = vmatprep.subr.mxu0 0.0
  %347 = vmatpush1.msra.mxu0 0.0
  %348 = vmatprep.subr.mxu0 0.0
  %349 = vmatpush1.msra.mxu0 0.0
  %350 = vmatprep.subr.mxu0 0.0
  %351 = vmatpush1.msra.mxu0 0.0
  %352 = vmatprep.subr.mxu0 0.0
  %353 = vmatpush1.msra.mxu0 0.0
  %354 = vmatprep.subr.mxu0 0.0
  %355 = vmatpush1.msra.mxu0 0.0
  %356 = vmatprep.subr.mxu0 0.0
  %357 = vmatpush1.msra.mxu0 0.0
  %358 = vmatprep.subr.mxu0 0.0
  %359 = vmatpush1.msra.mxu0 0.0
  %360 = vmatprep.subr.mxu0 0.0
  %361 = vmatpush1.msra.mxu0 0.0
  %362 = vmatprep.subr.mxu0 0.0
  %363 = vmatpush1.msra.mxu0 0.0
  %364 = vmatprep.subr.mxu0 0.0
  %365 = vmatpush1.msra.mxu0 0.0
  %366 = vmatprep.subr.mxu0 0.0
  %367 = vmatpush1.msra.mxu0 0.0
  %368 = vmatprep.subr.mxu0 0.0
  %369 = vmatpush1.msra.mxu0 0.0
  %370 = vmatprep.subr.mxu0 0.0
  %371 = vmatpush1.msra.mxu0 0.0
  %372 = vmatprep.subr.mxu0 0.0
  %373 = vmatpush1.msra.mxu0 0.0
  %374 = vmatprep.subr.mxu0 0.0
  %375 = vmatpush1.msra.mxu0 0.0
  %376 = vmatprep.subr.mxu0 0.0
  %377 = vmatpush1.msra.mxu0 0.0
  %378 = vmatprep.mubr.f32.mxu0 0.0
  %379 = vmatmul.mubr.f32.gmra.mrb[0].mxu0 %v312
  %v380 = vpop.f32.mrb[0].mxu0
  %v381 = vadd.f32 0.0, %v380
  %v382 = vpop.f32.mrb[0].mxu0
  %383 = vdwg.mxu0
  %v384 = vadd.f32 %v267, %v381
  %v385 = vxor.u32 %v384, 2147483648
  %v386 = vmul.f32 %v385, 1.442695
  %v387 = vpow.pop %v386
  %v388 = vadd.f32 %v387, 1.0
  %v389 = vrcp.pop %v388
  %v390 = vmul.f32 1.0, %v389
  %v391 = vtanh.pop %v384
  %v392 = vmul.f32 %v390, 0.0
  %394 = vrot.lane.b32.xlu0 %v391, 64
  %v395 = vpop.permute.xlu0 %394
  %v397 = vmul.f32 %v390, %v395
  %399 = vrot.lane.b32.xlu0 %v397, 32
  %v400 = vpop.permute.xlu0 %399
  %v402 = vadd.f32 %v392, %v400
  %v403 = vtanh.pop %v402
  %405 = vrot.lane.b32.xlu0 %v403, 64
  %v406 = vpop.permute.xlu0 %405
  %v408 = vmul.f32 %v390, %v406
  %409 = vmatprep.subr.mxu0 0.0
  %410 = vmatpush1.msra.mxu0 %v299
  %411 = vmatprep.subr.mxu0 0.0
  %412 = vmatpush1.msra.mxu0 %v300
  %413 = vmatprep.subr.mxu0 0.0
  %414 = vmatpush1.msra.mxu0 %v301
  %415 = vmatprep.subr.mxu0 0.0
  %416 = vmatpush1.msra.mxu0 %v302
  %417 = vmatprep.subr.mxu0 0.0
  %418 = vmatpush1.msra.mxu0 0.0
  %419 = vmatprep.subr.mxu0 0.0
  %420 = vmatpush1.msra.mxu0 0.0
  %421 = vmatprep.subr.mxu0 0.0
  %422 = vmatpush1.msra.mxu0 0.0
  %423 = vmatprep.subr.mxu0 0.0
  %424 = vmatpush1.msra.mxu0 0.0
  %425 = vmatprep.subr.mxu0 0.0
  %426 = vmatpush1.msra.mxu0 0.0
  %427 = vmatprep.subr.mxu0 0.0
  %428 = vmatpush1.msra.mxu0 0.0
  %429 = vmatprep.subr.mxu0 0.0
  %430 = vmatpush1.msra.mxu0 0.0
  %431 = vmatprep.subr.mxu0 0.0
  %432 = vmatpush1.msra.mxu0 0.0
  %433 = vmatprep.subr.mxu0 0.0
  %434 = vmatpush1.msra.mxu0 0.0
  %435 = vmatprep.subr.mxu0 0.0
  %436 = vmatpush1.msra.mxu0 0.0
  %437 = vmatprep.subr.mxu0 0.0
  %438 = vmatpush1.msra.mxu0 0.0
  %439 = vmatprep.subr.mxu0 0.0
  %440 = vmatpush1.msra.mxu0 0.0
  %441 = vmatprep.subr.mxu0 0.0
  %442 = vmatpush1.msra.mxu0 0.0
  %443 = vmatprep.subr.mxu0 0.0
  %444 = vmatpush1.msra.mxu0 0.0
  %445 = vmatprep.subr.mxu0 0.0
  %446 = vmatpush1.msra.mxu0 0.0
  %447 = vmatprep.subr.mxu0 0.0
  %448 = vmatpush1.msra.mxu0 0.0
  %449 = vmatprep.subr.mxu0 0.0
  %450 = vmatpush1.msra.mxu0 0.0
  %451 = vmatprep.subr.mxu0 0.0
  %452 = vmatpush1.msra.mxu0 0.0
  %453 = vmatprep.subr.mxu0 0.0
  %454 = vmatpush1.msra.mxu0 0.0
  %455 = vmatprep.subr.mxu0 0.0
  %456 = vmatpush1.msra.mxu0 0.0
  %457 = vmatprep.subr.mxu0 0.0
  %458 = vmatpush1.msra.mxu0 0.0
  %459 = vmatprep.subr.mxu0 0.0
  %460 = vmatpush1.msra.mxu0 0.0
  %461 = vmatprep.subr.mxu0 0.0
  %462 = vmatpush1.msra.mxu0 0.0
  %463 = vmatprep.subr.mxu0 0.0
  %464 = vmatpush1.msra.mxu0 0.0
  %465 = vmatprep.subr.mxu0 0.0
  %466 = vmatpush1.msra.mxu0 0.0
  %467 = vmatprep.subr.mxu0 0.0
  %468 = vmatpush1.msra.mxu0 0.0
  %469 = vmatprep.subr.mxu0 0.0
  %470 = vmatpush1.msra.mxu0 0.0
  %471 = vmatprep.subr.mxu0 0.0
  %472 = vmatpush1.msra.mxu0 0.0
  %473 = vmatprep.mubr.f32.mxu0 0.0
  %474 = vmatmul.mubr.f32.gmra.mrb[0].mxu0 %v312
  %v475 = vpop.f32.mrb[0].mxu0
  %v476 = vadd.f32 0.0, %v475
  %v477 = vpop.f32.mrb[0].mxu0
  %478 = vdwg.mxu0
  %480 = vrot.lane.b32.xlu0 %v408, 32
  %v481 = vpop.permute.xlu0 %480
  %v482 = vsel %vm310, %v481, 0
  %484 = vmatprep.subr.mxu0 0.0
  %485 = vmatpush1.msra.mxu0 %v295
  %486 = vmatprep.subr.mxu0 0.0
  %487 = vmatpush1.msra.mxu0 %v296
  %488 = vmatprep.subr.mxu0 0.0
  %489 = vmatpush1.msra.mxu0 %v297
  %490 = vmatprep.subr.mxu0 0.0
  %491 = vmatpush1.msra.mxu0 %v298
  %492 = vmatprep.subr.mxu0 0.0
  %493 = vmatpush1.msra.mxu0 0.0
  %494 = vmatprep.subr.mxu0 0.0
  %495 = vmatpush1.msra.mxu0 0.0
  %496 = vmatprep.subr.mxu0 0.0
  %497 = vmatpush1.msra.mxu0 0.0
  %498 = vmatprep.subr.mxu0 0.0
  %499 = vmatpush1.msra.mxu0 0.0
  %500 = vmatprep.subr.mxu0 0.0
  %501 = vmatpush1.msra.mxu0 0.0
  %502 = vmatprep.subr.mxu0 0.0
  %503 = vmatpush1.msra.mxu0 0.0
  %504 = vmatprep.subr.mxu0 0.0
  %505 = vmatpush1.msra.mxu0 0.0
  %506 = vmatprep.subr.mxu0 0.0
  %507 = vmatpush1.msra.mxu0 0.0
  %508 = vmatprep.subr.mxu0 0.0
  %509 = vmatpush1.msra.mxu0 0.0
  %510 = vmatprep.subr.mxu0 0.0
  %511 = vmatpush1.msra.mxu0 0.0
  %512 = vmatprep.subr.mxu0 0.0
  %513 = vmatpush1.msra.mxu0 0.0
  %514 = vmatprep.subr.mxu0 0.0
  %515 = vmatpush1.msra.mxu0 0.0
  %516 = vmatprep.subr.mxu0 0.0
  %517 = vmatpush1.msra.mxu0 0.0
  %518 = vmatprep.subr.mxu0 0.0
  %519 = vmatpush1.msra.mxu0 0.0
  %520 = vmatprep.subr.mxu0 0.0
  %521 = vmatpush1.msra.mxu0 0.0
  %522 = vmatprep.subr.mxu0 0.0
  %523 = vmatpush1.msra.mxu0 0.0
  %524 = vmatprep.subr.mxu0 0.0
  %525 = vmatpush1.msra.mxu0 0.0
  %526 = vmatprep.subr.mxu0 0.0
  %527 = vmatpush1.msra.mxu0 0.0
  %528 = vmatprep.subr.mxu0 0.0
  %529 = vmatpush1.msra.mxu0 0.0
  %530 = vmatprep.subr.mxu0 0.0
  %531 = vmatpush1.msra.mxu0 0.0
  %532 = vmatprep.subr.mxu0 0.0
  %533 = vmatpush1.msra.mxu0 0.0
  %534 = vmatprep.subr.mxu0 0.0
  %535 = vmatpush1.msra.mxu0 0.0
  %536 = vmatprep.subr.mxu0 0.0
  %537 = vmatpush1.msra.mxu0 0.0
  %538 = vmatprep.subr.mxu0 0.0
  %539 = vmatpush1.msra.mxu0 0.0
  %540 = vmatprep.subr.mxu0 0.0
  %541 = vmatpush1.msra.mxu0 0.0
  %542 = vmatprep.subr.mxu0 0.0
  %543 = vmatpush1.msra.mxu0 0.0
  %544 = vmatprep.subr.mxu0 0.0
  %545 = vmatpush1.msra.mxu0 0.0
  %546 = vmatprep.subr.mxu0 0.0
  %547 = vmatpush1.msra.mxu0 0.0
  %548 = vmatprep.mubr.f32.mxu0 0.0
  %549 = vmatmul.mubr.f32.gmra.mrb[0].mxu0 %v482
  %v550 = vpop.f32.mrb[0].mxu0
  %v551 = vadd.f32 %v476, %v550
  %v552 = vpop.f32.mrb[0].mxu0
  %553 = vdwg.mxu0
  %v554 = vadd.f32 %v551, %v308
  %v555 = vxor.u32 %v554, 2147483648
  %v556 = vmul.f32 %v555, 1.442695
  %v557 = vpow.pop %v556
  %v558 = vadd.f32 %v557, 1.0
  %v559 = vrcp.pop %v558
  %v560 = vmul.f32 1.0, %v559
  %v561 = vtanh.pop %v554
  %v562 = vmul.f32 %v560, 0.0
  %564 = vrot.lane.b32.xlu0 %v561, 64
  %v565 = vpop.permute.xlu0 %564
  %v567 = vmul.f32 %v560, %v565
  %569 = vrot.lane.b32.xlu0 %v567, 32
  %v570 = vpop.permute.xlu0 %569
  %v572 = vadd.f32 %v562, %v570
  %v573 = vtanh.pop %v572
  %575 = vrot.lane.b32.xlu0 %v573, 64
  %v576 = vpop.permute.xlu0 %575
  %v578 = vmul.f32 %v560, %v576
  %579 = vmatprep.subr.mxu0 0.0
  %580 = vmatpush1.msra.mxu0 %v77
  %581 = vmatprep.subr.mxu0 0.0
  %582 = vmatpush1.msra.mxu0 %v78
  %583 = vmatprep.subr.mxu0 0.0
  %584 = vmatpush1.msra.mxu0 %v79
  %585 = vmatprep.subr.mxu0 0.0
  %586 = vmatpush1.msra.mxu0 %v80
  %587 = vmatprep.subr.mxu0 0.0
  %588 = vmatpush1.msra.mxu0 0.0
  %589 = vmatprep.subr.mxu0 0.0
  %590 = vmatpush1.msra.mxu0 0.0
  %591 = vmatprep.subr.mxu0 0.0
  %592 = vmatpush1.msra.mxu0 0.0
  %593 = vmatprep.subr.mxu0 0.0
  %594 = vmatpush1.msra.mxu0 0.0
  %595 = vmatprep.subr.mxu0 0.0
  %596 = vmatpush1.msra.mxu0 0.0
  %597 = vmatprep.subr.mxu0 0.0
  %598 = vmatpush1.msra.mxu0 0.0
  %599 = vmatprep.subr.mxu0 0.0
  %600 = vmatpush1.msra.mxu0 0.0
  %601 = vmatprep.subr.mxu0 0.0
  %602 = vmatpush1.msra.mxu0 0.0
  %603 = vmatprep.subr.mxu0 0.0
  %604 = vmatpush1.msra.mxu0 0.0
  %605 = vmatprep.subr.mxu0 0.0
  %606 = vmatpush1.msra.mxu0 0.0
  %607 = vmatprep.subr.mxu0 0.0
  %608 = vmatpush1.msra.mxu0 0.0
  %609 = vmatprep.subr.mxu0 0.0
  %610 = vmatpush1.msra.mxu0 0.0
  %611 = vmatprep.subr.mxu0 0.0
  %612 = vmatpush1.msra.mxu0 0.0
  %613 = vmatprep.subr.mxu0 0.0
  %614 = vmatpush1.msra.mxu0 0.0
  %615 = vmatprep.subr.mxu0 0.0
  %616 = vmatpush1.msra.mxu0 0.0
  %617 = vmatprep.subr.mxu0 0.0
  %618 = vmatpush1.msra.mxu0 0.0
  %619 = vmatprep.subr.mxu0 0.0
  %620 = vmatpush1.msra.mxu0 0.0
  %621 = vmatprep.subr.mxu0 0.0
  %622 = vmatpush1.msra.mxu0 0.0
  %623 = vmatprep.subr.mxu0 0.0
  %624 = vmatpush1.msra.mxu0 0.0
  %625 = vmatprep.subr.mxu0 0.0
  %626 = vmatpush1.msra.mxu0 0.0
  %627 = vmatprep.subr.mxu0 0.0
  %628 = vmatpush1.msra.mxu0 0.0
  %629 = vmatprep.subr.mxu0 0.0
  %630 = vmatpush1.msra.mxu0 0.0
  %631 = vmatprep.subr.mxu0 0.0
  %632 = vmatpush1.msra.mxu0 0.0
  %633 = vmatprep.subr.mxu0 0.0
  %634 = vmatpush1.msra.mxu0 0.0
  %635 = vmatprep.subr.mxu0 0.0
  %636 = vmatpush1.msra.mxu0 0.0
  %637 = vmatprep.subr.mxu0 0.0
  %638 = vmatpush1.msra.mxu0 0.0
  %639 = vmatprep.subr.mxu0 0.0
  %640 = vmatpush1.msra.mxu0 0.0
  %641 = vmatprep.subr.mxu0 0.0
  %642 = vmatpush1.msra.mxu0 0.0
  %643 = vmatprep.mubr.f32.mxu0 0.0
  %644 = vmatmul.mubr.f32.gmra.mrb[0].mxu0 %v482
  %v645 = vpop.f32.mrb[0].mxu0
  %v646 = vadd.f32 0.0, %v645
  %v647 = vpop.f32.mrb[0].mxu0
  %648 = vdwg.mxu0
  %v649 = vadd.f32 %v272, %v646
  %v650 = vxor.u32 %v649, 2147483648
  %v651 = vmul.f32 %v650, 1.442695
  %v652 = vpow.pop %v651
  %v653 = vadd.f32 %v652, 1.0
  %v654 = vrcp.pop %v653
  %v655 = vmul.f32 1.0, %v654
  %v656 = vtanh.pop %v649
  %v657 = vmul.f32 %v655, %v402
  %659 = vrot.lane.b32.xlu0 %v656, 64
  %v660 = vpop.permute.xlu0 %659
  %v662 = vmul.f32 %v655, %v660
  %664 = vrot.lane.b32.xlu0 %v662, 32
  %v665 = vpop.permute.xlu0 %664
  %v667 = vadd.f32 %v657, %v665
  %v668 = vtanh.pop %v667
  %670 = vrot.lane.b32.xlu0 %v668, 64
  %v671 = vpop.permute.xlu0 %670
  %v673 = vmul.f32 %v655, %v671
  %675 = vrot.lane.b32.xlu0 %v578, 32
  %v676 = vpop.permute.xlu0 %675
  %v677 = vsel %vm310, %v676, 0
  %679 = vmatprep.subr.mxu0 0.0
  %680 = vmatpush1.msra.mxu0 %v299
  %681 = vmatprep.subr.mxu0 0.0
  %682 = vmatpush1.msra.mxu0 %v300
  %683 = vmatprep.subr.mxu0 0.0
  %684 = vmatpush1.msra.mxu0 %v301
  %685 = vmatprep.subr.mxu0 0.0
  %686 = vmatpush1.msra.mxu0 %v302
  %687 = vmatprep.subr.mxu0 0.0
  %688 = vmatpush1.msra.mxu0 0.0
  %689 = vmatprep.subr.mxu0 0.0
  %690 = vmatpush1.msra.mxu0 0.0
  %691 = vmatprep.subr.mxu0 0.0
  %692 = vmatpush1.msra.mxu0 0.0
  %693 = vmatprep.subr.mxu0 0.0
  %694 = vmatpush1.msra.mxu0 0.0
  %695 = vmatprep.subr.mxu0 0.0
  %696 = vmatpush1.msra.mxu0 0.0
  %697 = vmatprep.subr.mxu0 0.0
  %698 = vmatpush1.msra.mxu0 0.0
  %699 = vmatprep.subr.mxu0 0.0
  %700 = vmatpush1.msra.mxu0 0.0
  %701 = vmatprep.subr.mxu0 0.0
  %702 = vmatpush1.msra.mxu0 0.0
  %703 = vmatprep.subr.mxu0 0.0
  %704 = vmatpush1.msra.mxu0 0.0
  %705 = vmatprep.subr.mxu0 0.0
  %706 = vmatpush1.msra.mxu0 0.0
  %707 = vmatprep.subr.mxu0 0.0
  %708 = vmatpush1.msra.mxu0 0.0
  %709 = vmatprep.subr.mxu0 0.0
  %710 = vmatpush1.msra.mxu0 0.0
  %711 = vmatprep.subr.mxu0 0.0
  %712 = vmatpush1.msra.mxu0 0.0
  %713 = vmatprep.subr.mxu0 0.0
  %714 = vmatpush1.msra.mxu0 0.0
  %715 = vmatprep.subr.mxu0 0.0
  %716 = vmatpush1.msra.mxu0 0.0
  %717 = vmatprep.subr.mxu0 0.0
  %718 = vmatpush1.msra.mxu0 0.0
  %719 = vmatprep.subr.mxu0 0.0
  %720 = vmatpush1.msra.mxu0 0.0
  %721 = vmatprep.subr.mxu0 0.0
  %722 = vmatpush1.msra.mxu0 0.0
  %723 = vmatprep.subr.mxu0 0.0
  %724 = vmatpush1.msra.mxu0 0.0
  %725 = vmatprep.subr.mxu0 0.0
  %726 = vmatpush1.msra.mxu0 0.0
  %727 = vmatprep.subr.mxu0 0.0
  %728 = vmatpush1.msra.mxu0 0.0
  %729 = vmatprep.subr.mxu0 0.0
  %730 = vmatpush1.msra.mxu0 0.0
  %731 = vmatprep.subr.mxu0 0.0
  %732 = vmatpush1.msra.mxu0 0.0
  %733 = vmatprep.subr.mxu0 0.0
  %734 = vmatpush1.msra.mxu0 0.0
  %735 = vmatprep.subr.mxu0 0.0
  %736 = vmatpush1.msra.mxu0 0.0
  %737 = vmatprep.subr.mxu0 0.0
  %738 = vmatpush1.msra.mxu0 0.0
  %739 = vmatprep.subr.mxu0 0.0
  %740 = vmatpush1.msra.mxu0 0.0
  %741 = vmatprep.subr.mxu0 0.0
  %742 = vmatpush1.msra.mxu0 0.0
  %743 = vmatprep.mubr.f32.mxu0 0.0
  %744 = vmatmul.mubr.f32.gmra.mrb[0].mxu0 %v677
  %v745 = vpop.f32.mrb[0].mxu0
  %v746 = vadd.f32 0.0, %v745
  %v747 = vpop.f32.mrb[0].mxu0
  %748 = vdwg.mxu0
  %750 = vrot.lane.b32.xlu0 %v673, 32
  %v751 = vpop.permute.xlu0 %750
  %v752 = vsel %vm310, %v751, 0
  %754 = vmatprep.subr.mxu0 0.0
  %755 = vmatpush1.msra.mxu0 %v295
  %756 = vmatprep.subr.mxu0 0.0
  %757 = vmatpush1.msra.mxu0 %v296
  %758 = vmatprep.subr.mxu0 0.0
  %759 = vmatpush1.msra.mxu0 %v297
  %760 = vmatprep.subr.mxu0 0.0
  %761 = vmatpush1.msra.mxu0 %v298
  %762 = vmatprep.subr.mxu0 0.0
  %763 = vmatpush1.msra.mxu0 0.0
  %764 = vmatprep.subr.mxu0 0.0
  %765 = vmatpush1.msra.mxu0 0.0
  %766 = vmatprep.subr.mxu0 0.0
  %767 = vmatpush1.msra.mxu0 0.0
  %768 = vmatprep.subr.mxu0 0.0
  %769 = vmatpush1.msra.mxu0 0.0
  %770 = vmatprep.subr.mxu0 0.0
  %771 = vmatpush1.msra.mxu0 0.0
  %772 = vmatprep.subr.mxu0 0.0
  %773 = vmatpush1.msra.mxu0 0.0
  %774 = vmatprep.subr.mxu0 0.0
  %775 = vmatpush1.msra.mxu0 0.0
  %776 = vmatprep.subr.mxu0 0.0
  %777 = vmatpush1.msra.mxu0 0.0
  %778 = vmatprep.subr.mxu0 0.0
  %779 = vmatpush1.msra.mxu0 0.0
  %780 = vmatprep.subr.mxu0 0.0
  %781 = vmatpush1.msra.mxu0 0.0
  %782 = vmatprep.subr.mxu0 0.0
  %783 = vmatpush1.msra.mxu0 0.0
  %784 = vmatprep.subr.mxu0 0.0
  %785 = vmatpush1.msra.mxu0 0.0
  %786 = vmatprep.subr.mxu0 0.0
  %787 = vmatpush1.msra.mxu0 0.0
  %788 = vmatprep.subr.mxu0 0.0
  %789 = vmatpush1.msra.mxu0 0.0
  %790 = vmatprep.subr.mxu0 0.0
  %791 = vmatpush1.msra.mxu0 0.0
  %792 = vmatprep.subr.mxu0 0.0
  %793 = vmatpush1.msra.mxu0 0.0
  %794 = vmatprep.subr.mxu0 0.0
  %795 = vmatpush1.msra.mxu0 0.0
  %796 = vmatprep.subr.mxu0 0.0
  %797 = vmatpush1.msra.mxu0 0.0
  %798 = vmatprep.subr.mxu0 0.0
  %799 = vmatpush1.msra.mxu0 0.0
  %800 = vmatprep.subr.mxu0 0.0
  %801 = vmatpush1.msra.mxu0 0.0
  %802 = vmatprep.subr.mxu0 0.0
  %803 = vmatpush1.msra.mxu0 0.0
  %804 = vmatprep.subr.mxu0 0.0
  %805 = vmatpush1.msra.mxu0 0.0
  %806 = vmatprep.subr.mxu0 0.0
  %807 = vmatpush1.msra.mxu0 0.0
  %808 = vmatprep.subr.mxu0 0.0
  %809 = vmatpush1.msra.mxu0 0.0
  %810 = vmatprep.subr.mxu0 0.0
  %811 = vmatpush1.msra.mxu0 0.0
  %812 = vmatprep.subr.mxu0 0.0
  %813 = vmatpush1.msra.mxu0 0.0
  %814 = vmatprep.subr.mxu0 0.0
  %815 = vmatpush1.msra.mxu0 0.0
  %816 = vmatprep.subr.mxu0 0.0
  %817 = vmatpush1.msra.mxu0 0.0
  %818 = vmatprep.mubr.f32.mxu0 0.0
  %819 = vmatmul.mubr.f32.gmra.mrb[0].mxu0 %v752
  %v820 = vpop.f32.mrb[0].mxu0
  %v821 = vadd.f32 %v746, %v820
  %v822 = vpop.f32.mrb[0].mxu0
  %823 = vdwg.mxu0
  %v824 = vadd.f32 %v821, %v308
  %v825 = vxor.u32 %v824, 2147483648
  %v826 = vmul.f32 %v825, 1.442695
  %v827 = vpow.pop %v826
  %v828 = vadd.f32 %v827, 1.0
  %v829 = vrcp.pop %v828
  %v830 = vmul.f32 1.0, %v829
  %v831 = vtanh.pop %v824
  %v832 = vmul.f32 %v830, %v572
  %834 = vrot.lane.b32.xlu0 %v831, 64
  %v835 = vpop.permute.xlu0 %834
  %v837 = vmul.f32 %v830, %v835
  %839 = vrot.lane.b32.xlu0 %v837, 32
  %v840 = vpop.permute.xlu0 %839
  %v842 = vadd.f32 %v832, %v840
  %v843 = vtanh.pop %v842
  %845 = vrot.lane.b32.xlu0 %v843, 64
  %v846 = vpop.permute.xlu0 %845
  %v848 = vmul.f32 %v830, %v846
  %849 = vmatprep.subr.mxu0 0.0
  %850 = vmatpush1.msra.mxu0 %v77
  %851 = vmatprep.subr.mxu0 0.0
  %852 = vmatpush1.msra.mxu0 %v78
  %853 = vmatprep.subr.mxu0 0.0
  %854 = vmatpush1.msra.mxu0 %v79
  %855 = vmatprep.subr.mxu0 0.0
  %856 = vmatpush1.msra.mxu0 %v80
  %857 = vmatprep.subr.mxu0 0.0
  %858 = vmatpush1.msra.mxu0 0.0
  %859 = vmatprep.subr.mxu0 0.0
  %860 = vmatpush1.msra.mxu0 0.0
  %861 = vmatprep.subr.mxu0 0.0
  %862 = vmatpush1.msra.mxu0 0.0
  %863 = vmatprep.subr.mxu0 0.0
  %864 = vmatpush1.msra.mxu0 0.0
  %865 = vmatprep.subr.mxu0 0.0
  %866 = vmatpush1.msra.mxu0 0.0
  %867 = vmatprep.subr.mxu0 0.0
  %868 = vmatpush1.msra.mxu0 0.0
  %869 = vmatprep.subr.mxu0 0.0
  %870 = vmatpush1.msra.mxu0 0.0
  %871 = vmatprep.subr.mxu0 0.0
  %872 = vmatpush1.msra.mxu0 0.0
  %873 = vmatprep.subr.mxu0 0.0
  %874 = vmatpush1.msra.mxu0 0.0
  %875 = vmatprep.subr.mxu0 0.0
  %876 = vmatpush1.msra.mxu0 0.0
  %877 = vmatprep.subr.mxu0 0.0
  %878 = vmatpush1.msra.mxu0 0.0
  %879 = vmatprep.subr.mxu0 0.0
  %880 = vmatpush1.msra.mxu0 0.0
  %881 = vmatprep.subr.mxu0 0.0
  %882 = vmatpush1.msra.mxu0 0.0
  %883 = vmatprep.subr.mxu0 0.0
  %884 = vmatpush1.msra.mxu0 0.0
  %885 = vmatprep.subr.mxu0 0.0
  %886 = vmatpush1.msra.mxu0 0.0
  %887 = vmatprep.subr.mxu0 0.0
  %888 = vmatpush1.msra.mxu0 0.0
  %889 = vmatprep.subr.mxu0 0.0
  %890 = vmatpush1.msra.mxu0 0.0
  %891 = vmatprep.subr.mxu0 0.0
  %892 = vmatpush1.msra.mxu0 0.0
  %893 = vmatprep.subr.mxu0 0.0
  %894 = vmatpush1.msra.mxu0 0.0
  %895 = vmatprep.subr.mxu0 0.0
  %896 = vmatpush1.msra.mxu0 0.0
  %897 = vmatprep.subr.mxu0 0.0
  %898 = vmatpush1.msra.mxu0 0.0
  %899 = vmatprep.subr.mxu0 0.0
  %900 = vmatpush1.msra.mxu0 0.0
  %901 = vmatprep.subr.mxu0 0.0
  %902 = vmatpush1.msra.mxu0 0.0
  %903 = vmatprep.subr.mxu0 0.0
  %904 = vmatpush1.msra.mxu0 0.0
  %905 = vmatprep.subr.mxu0 0.0
  %906 = vmatpush1.msra.mxu0 0.0
  %907 = vmatprep.subr.mxu0 0.0
  %908 = vmatpush1.msra.mxu0 0.0
  %909 = vmatprep.subr.mxu0 0.0
  %910 = vmatpush1.msra.mxu0 0.0
  %911 = vmatprep.subr.mxu0 0.0
  %912 = vmatpush1.msra.mxu0 0.0
  %913 = vmatprep.mubr.f32.mxu0 0.0
  %914 = vmatmul.mubr.f32.gmra.mrb[0].mxu0 %v752
  %v915 = vpop.f32.mrb[0].mxu0
  %v916 = vadd.f32 0.0, %v915
  %v917 = vpop.f32.mrb[0].mxu0
  %918 = vdwg.mxu0
  %v919 = vadd.f32 %v277, %v916
  %v920 = vxor.u32 %v919, 2147483648
  %v921 = vmul.f32 %v920, 1.442695
  %v922 = vpow.pop %v921
  %v923 = vadd.f32 %v922, 1.0
  %v924 = vrcp.pop %v923
  %v925 = vmul.f32 1.0, %v924
  %v926 = vtanh.pop %v919
  %v927 = vmul.f32 %v925, %v667
  %929 = vrot.lane.b32.xlu0 %v926, 64
  %v930 = vpop.permute.xlu0 %929
  %v932 = vmul.f32 %v925, %v930
  %934 = vrot.lane.b32.xlu0 %v932, 32
  %v935 = vpop.permute.xlu0 %934
  %v937 = vadd.f32 %v927, %v935
  %v938 = vtanh.pop %v937
  %940 = vrot.lane.b32.xlu0 %v938, 64
  %v941 = vpop.permute.xlu0 %940
  %v943 = vmul.f32 %v925, %v941
  %945 = vrot.lane.b32.xlu0 %v848, 32
  %v946 = vpop.permute.xlu0 %945
  %v947 = vsel %vm310, %v946, 0
  %949 = vmatprep.subr.mxu0 0.0
  %950 = vmatpush1.msra.mxu0 %v299
  %951 = vmatprep.subr.mxu0 0.0
  %952 = vmatpush1.msra.mxu0 %v300
  %953 = vmatprep.subr.mxu0 0.0
  %954 = vmatpush1.msra.mxu0 %v301
  %955 = vmatprep.subr.mxu0 0.0
  %956 = vmatpush1.msra.mxu0 %v302
  %957 = vmatprep.subr.mxu0 0.0
  %958 = vmatpush1.msra.mxu0 0.0
  %959 = vmatprep.subr.mxu0 0.0
  %960 = vmatpush1.msra.mxu0 0.0
  %961 = vmatprep.subr.mxu0 0.0
  %962 = vmatpush1.msra.mxu0 0.0
  %963 = vmatprep.subr.mxu0 0.0
  %964 = vmatpush1.msra.mxu0 0.0
  %965 = vmatprep.subr.mxu0 0.0
  %966 = vmatpush1.msra.mxu0 0.0
  %967 = vmatprep.subr.mxu0 0.0
  %968 = vmatpush1.msra.mxu0 0.0
  %969 = vmatprep.subr.mxu0 0.0
  %970 = vmatpush1.msra.mxu0 0.0
  %971 = vmatprep.subr.mxu0 0.0
  %972 = vmatpush1.msra.mxu0 0.0
  %973 = vmatprep.subr.mxu0 0.0
  %974 = vmatpush1.msra.mxu0 0.0
  %975 = vmatprep.subr.mxu0 0.0
  %976 = vmatpush1.msra.mxu0 0.0
  %977 = vmatprep.subr.mxu0 0.0
  %978 = vmatpush1.msra.mxu0 0.0
  %979 = vmatprep.subr.mxu0 0.0
  %980 = vmatpush1.msra.mxu0 0.0
  %981 = vmatprep.subr.mxu0 0.0
  %982 = vmatpush1.msra.mxu0 0.0
  %983 = vmatprep.subr.mxu0 0.0
  %984 = vmatpush1.msra.mxu0 0.0
  %985 = vmatprep.subr.mxu0 0.0
  %986 = vmatpush1.msra.mxu0 0.0
  %987 = vmatprep.subr.mxu0 0.0
  %988 = vmatpush1.msra.mxu0 0.0
  %989 = vmatprep.subr.mxu0 0.0
  %990 = vmatpush1.msra.mxu0 0.0
  %991 = vmatprep.subr.mxu0 0.0
  %992 = vmatpush1.msra.mxu0 0.0
  %993 = vmatprep.subr.mxu0 0.0
  %994 = vmatpush1.msra.mxu0 0.0
  %995 = vmatprep.subr.mxu0 0.0
  %996 = vmatpush1.msra.mxu0 0.0
  %997 = vmatprep.subr.mxu0 0.0
  %998 = vmatpush1.msra.mxu0 0.0
  %999 = vmatprep.subr.mxu0 0.0
  %1000 = vmatpush1.msra.mxu0 0.0
  %1001 = vmatprep.subr.mxu0 0.0
  %1002 = vmatpush1.msra.mxu0 0.0
  %1003 = vmatprep.subr.mxu0 0.0
  %1004 = vmatpush1.msra.mxu0 0.0
  %1005 = vmatprep.subr.mxu0 0.0
  %1006 = vmatpush1.msra.mxu0 0.0
  %1007 = vmatprep.subr.mxu0 0.0
  %1008 = vmatpush1.msra.mxu0 0.0
  %1009 = vmatprep.subr.mxu0 0.0
  %1010 = vmatpush1.msra.mxu0 0.0
  %1011 = vmatprep.subr.mxu0 0.0
  %1012 = vmatpush1.msra.mxu0 0.0
  %1013 = vmatprep.mubr.f32.mxu0 0.0
  %1014 = vmatmul.mubr.f32.gmra.mrb[0].mxu0 %v947
  %v1015 = vpop.f32.mrb[0].mxu0
  %v1016 = vadd.f32 0.0, %v1015
  %v1017 = vpop.f32.mrb[0].mxu0
  %1018 = vdwg.mxu0
  %1020 = vrot.lane.b32.xlu0 %v943, 32
  %v1021 = vpop.permute.xlu0 %1020
  %v1022 = vsel %vm310, %v1021, 0
  %1024 = vmatprep.subr.mxu0 0.0
  %1025 = vmatpush1.msra.mxu0 %v295
  %1026 = vmatprep.subr.mxu0 0.0
  %1027 = vmatpush1.msra.mxu0 %v296
  %1028 = vmatprep.subr.mxu0 0.0
  %1029 = vmatpush1.msra.mxu0 %v297
  %1030 = vmatprep.subr.mxu0 0.0
  %1031 = vmatpush1.msra.mxu0 %v298
  %1032 = vmatprep.subr.mxu0 0.0
  %1033 = vmatpush1.msra.mxu0 0.0
  %1034 = vmatprep.subr.mxu0 0.0
  %1035 = vmatpush1.msra.mxu0 0.0
  %1036 = vmatprep.subr.mxu0 0.0
  %1037 = vmatpush1.msra.mxu0 0.0
  %1038 = vmatprep.subr.mxu0 0.0
  %1039 = vmatpush1.msra.mxu0 0.0
  %1040 = vmatprep.subr.mxu0 0.0
  %1041 = vmatpush1.msra.mxu0 0.0
  %1042 = vmatprep.subr.mxu0 0.0
  %1043 = vmatpush1.msra.mxu0 0.0
  %1044 = vmatprep.subr.mxu0 0.0
  %1045 = vmatpush1.msra.mxu0 0.0
  %1046 = vmatprep.subr.mxu0 0.0
  %1047 = vmatpush1.msra.mxu0 0.0
  %1048 = vmatprep.subr.mxu0 0.0
  %1049 = vmatpush1.msra.mxu0 0.0
  %1050 = vmatprep.subr.mxu0 0.0
  %1051 = vmatpush1.msra.mxu0 0.0
  %1052 = vmatprep.subr.mxu0 0.0
  %1053 = vmatpush1.msra.mxu0 0.0
  %1054 = vmatprep.subr.mxu0 0.0
  %1055 = vmatpush1.msra.mxu0 0.0
  %1056 = vmatprep.subr.mxu0 0.0
  %1057 = vmatpush1.msra.mxu0 0.0
  %1058 = vmatprep.subr.mxu0 0.0
  %1059 = vmatpush1.msra.mxu0 0.0
  %1060 = vmatprep.subr.mxu0 0.0
  %1061 = vmatpush1.msra.mxu0 0.0
  %1062 = vmatprep.subr.mxu0 0.0
  %1063 = vmatpush1.msra.mxu0 0.0
  %1064 = vmatprep.subr.mxu0 0.0
  %1065 = vmatpush1.msra.mxu0 0.0
  %1066 = vmatprep.subr.mxu0 0.0
  %1067 = vmatpush1.msra.mxu0 0.0
  %1068 = vmatprep.subr.mxu0 0.0
  %1069 = vmatpush1.msra.mxu0 0.0
  %1070 = vmatprep.subr.mxu0 0.0
  %1071 = vmatpush1.msra.mxu0 0.0
  %1072 = vmatprep.subr.mxu0 0.0
  %1073 = vmatpush1.msra.mxu0 0.0
  %1074 = vmatprep.subr.mxu0 0.0
  %1075 = vmatpush1.msra.mxu0 0.0
  %1076 = vmatprep.subr.mxu0 0.0
  %1077 = vmatpush1.msra.mxu0 0.0
  %1078 = vmatprep.subr.mxu0 0.0
  %1079 = vmatpush1.msra.mxu0 0.0
  %1080 = vmatprep.subr.mxu0 0.0
  %1081 = vmatpush1.msra.mxu0 0.0
  %1082 = vmatprep.subr.mxu0 0.0
  %1083 = vmatpush1.msra.mxu0 0.0
  %1084 = vmatprep.subr.mxu0 0.0
  %1085 = vmatpush1.msra.mxu0 0.0
  %1086 = vmatprep.subr.mxu0 0.0
  %1087 = vmatpush1.msra.mxu0 0.0
  %1088 = vmatprep.mubr.f32.mxu0 0.0
  %1089 = vmatmul.mubr.f32.gmra.mrb[0].mxu0 %v1022
  %v1090 = vpop.f32.mrb[0].mxu0
  %v1091 = vadd.f32 %v1016, %v1090
  %v1092 = vpop.f32.mrb[0].mxu0
  %1093 = vdwg.mxu0
  %v1094 = vadd.f32 %v1091, %v308
  %v1095 = vxor.u32 %v1094, 2147483648
  %v1096 = vmul.f32 %v1095, 1.442695
  %v1097 = vpow.pop %v1096
  %v1098 = vadd.f32 %v1097, 1.0
  %v1099 = vrcp.pop %v1098
  %v1100 = vmul.f32 1.0, %v1099
  %v1101 = vtanh.pop %v1094
  %v1102 = vmul.f32 %v1100, %v842
  %1104 = vrot.lane.b32.xlu0 %v1101, 64
  %v1105 = vpop.permute.xlu0 %1104
  %v1107 = vmul.f32 %v1100, %v1105
  %1109 = vrot.lane.b32.xlu0 %v1107, 32
  %v1110 = vpop.permute.xlu0 %1109
  %v1112 = vadd.f32 %v1102, %v1110
  %v1113 = vtanh.pop %v1112
  %1115 = vrot.lane.b32.xlu0 %v1113, 64
  %v1116 = vpop.permute.xlu0 %1115
  %v1118 = vmul.f32 %v1100, %v1116
  %1119 = vmatprep.subr.mxu0 0.0
  %1120 = vmatpush1.msra.mxu0 %v77
  %1121 = vmatprep.subr.mxu0 0.0
  %1122 = vmatpush1.msra.mxu0 %v78
  %1123 = vmatprep.subr.mxu0 0.0
  %1124 = vmatpush1.msra.mxu0 %v79
  %1125 = vmatprep.subr.mxu0 0.0
  %1126 = vmatpush1.msra.mxu0 %v80
  %1127 = vmatprep.subr.mxu0 0.0
  %1128 = vmatpush1.msra.mxu0 0.0
  %1129 = vmatprep.subr.mxu0 0.0
  %1130 = vmatpush1.msra.mxu0 0.0
  %1131 = vmatprep.subr.mxu0 0.0
  %1132 = vmatpush1.msra.mxu0 0.0
  %1133 = vmatprep.subr.mxu0 0.0
  %1134 = vmatpush1.msra.mxu0 0.0
  %1135 = vmatprep.subr.mxu0 0.0
  %1136 = vmatpush1.msra.mxu0 0.0
  %1137 = vmatprep.subr.mxu0 0.0
  %1138 = vmatpush1.msra.mxu0 0.0
  %1139 = vmatprep.subr.mxu0 0.0
  %1140 = vmatpush1.msra.mxu0 0.0
  %1141 = vmatprep.subr.mxu0 0.0
  %1142 = vmatpush1.msra.mxu0 0.0
  %1143 = vmatprep.subr.mxu0 0.0
  %1144 = vmatpush1.msra.mxu0 0.0
  %1145 = vmatprep.subr.mxu0 0.0
  %1146 = vmatpush1.msra.mxu0 0.0
  %1147 = vmatprep.subr.mxu0 0.0
  %1148 = vmatpush1.msra.mxu0 0.0
  %1149 = vmatprep.subr.mxu0 0.0
  %1150 = vmatpush1.msra.mxu0 0.0
  %1151 = vmatprep.subr.mxu0 0.0
  %1152 = vmatpush1.msra.mxu0 0.0
  %1153 = vmatprep.subr.mxu0 0.0
  %1154 = vmatpush1.msra.mxu0 0.0
  %1155 = vmatprep.subr.mxu0 0.0
  %1156 = vmatpush1.msra.mxu0 0.0
  %1157 = vmatprep.subr.mxu0 0.0
  %1158 = vmatpush1.msra.mxu0 0.0
  %1159 = vmatprep.subr.mxu0 0.0
  %1160 = vmatpush1.msra.mxu0 0.0
  %1161 = vmatprep.subr.mxu0 0.0
  %1162 = vmatpush1.msra.mxu0 0.0
  %1163 = vmatprep.subr.mxu0 0.0
  %1164 = vmatpush1.msra.mxu0 0.0
  %1165 = vmatprep.subr.mxu0 0.0
  %1166 = vmatpush1.msra.mxu0 0.0
  %1167 = vmatprep.subr.mxu0 0.0
  %1168 = vmatpush1.msra.mxu0 0.0
  %1169 = vmatprep.subr.mxu0 0.0
  %1170 = vmatpush1.msra.mxu0 0.0
  %1171 = vmatprep.subr.mxu0 0.0
  %1172 = vmatpush1.msra.mxu0 0.0
  %1173 = vmatprep.subr.mxu0 0.0
  %1174 = vmatpush1.msra.mxu0 0.0
  %1175 = vmatprep.subr.mxu0 0.0
  %1176 = vmatpush1.msra.mxu0 0.0
  %1177 = vmatprep.subr.mxu0 0.0
  %1178 = vmatpush1.msra.mxu0 0.0
  %1179 = vmatprep.subr.mxu0 0.0
  %1180 = vmatpush1.msra.mxu0 0.0
  %1181 = vmatprep.subr.mxu0 0.0
  %1182 = vmatpush1.msra.mxu0 0.0
  %1183 = vmatprep.mubr.f32.mxu0 0.0
  %1184 = vmatmul.mubr.f32.gmra.mrb[0].mxu0 %v1022
  %v1185 = vpop.f32.mrb[0].mxu0
  %v1186 = vadd.f32 0.0, %v1185
  %v1187 = vpop.f32.mrb[0].mxu0
  %1188 = vdwg.mxu0
  %v1189 = vadd.f32 %v282, %v1186
  %v1190 = vxor.u32 %v1189, 2147483648
  %v1191 = vmul.f32 %v1190, 1.442695
  %v1192 = vpow.pop %v1191
  %v1193 = vadd.f32 %v1192, 1.0
  %v1194 = vrcp.pop %v1193
  %v1195 = vmul.f32 1.0, %v1194
  %v1196 = vtanh.pop %v1189
  %v1197 = vmul.f32 %v1195, %v937
  %1199 = vrot.lane.b32.xlu0 %v1196, 64
  %v1200 = vpop.permute.xlu0 %1199
  %v1202 = vmul.f32 %v1195, %v1200
  %1204 = vrot.lane.b32.xlu0 %v1202, 32
  %v1205 = vpop.permute.xlu0 %1204
  %v1207 = vadd.f32 %v1197, %v1205
  %v1208 = vtanh.pop %v1207
  %1210 = vrot.lane.b32.xlu0 %v1208, 64
  %v1211 = vpop.permute.xlu0 %1210
  %v1213 = vmul.f32 %v1195, %v1211
  %1215 = vrot.lane.b32.xlu0 %v1118, 32
  %v1216 = vpop.permute.xlu0 %1215
  %v1217 = vsel %vm310, %v1216, 0
  %1219 = vmatprep.subr.mxu0 0.0
  %1220 = vmatpush1.msra.mxu0 %v299
  %1221 = vmatprep.subr.mxu0 0.0
  %1222 = vmatpush1.msra.mxu0 %v300
  %1223 = vmatprep.subr.mxu0 0.0
  %1224 = vmatpush1.msra.mxu0 %v301
  %1225 = vmatprep.subr.mxu0 0.0
  %1226 = vmatpush1.msra.mxu0 %v302
  %1227 = vmatprep.subr.mxu0 0.0
  %1228 = vmatpush1.msra.mxu0 0.0
  %1229 = vmatprep.subr.mxu0 0.0
  %1230 = vmatpush1.msra.mxu0 0.0
  %1231 = vmatprep.subr.mxu0 0.0
  %1232 = vmatpush1.msra.mxu0 0.0
  %1233 = vmatprep.subr.mxu0 0.0
  %1234 = vmatpush1.msra.mxu0 0.0
  %1235 = vmatprep.subr.mxu0 0.0
  %1236 = vmatpush1.msra.mxu0 0.0
  %1237 = vmatprep.subr.mxu0 0.0
  %1238 = vmatpush1.msra.mxu0 0.0
  %1239 = vmatprep.subr.mxu0 0.0
  %1240 = vmatpush1.msra.mxu0 0.0
  %1241 = vmatprep.subr.mxu0 0.0
  %1242 = vmatpush1.msra.mxu0 0.0
  %1243 = vmatprep.subr.mxu0 0.0
  %1244 = vmatpush1.msra.mxu0 0.0
  %1245 = vmatprep.subr.mxu0 0.0
  %1246 = vmatpush1.msra.mxu0 0.0
  %1247 = vmatprep.subr.mxu0 0.0
  %1248 = vmatpush1.msra.mxu0 0.0
  %1249 = vmatprep.subr.mxu0 0.0
  %1250 = vmatpush1.msra.mxu0 0.0
  %1251 = vmatprep.subr.mxu0 0.0
  %1252 = vmatpush1.msra.mxu0 0.0
  %1253 = vmatprep.subr.mxu0 0.0
  %1254 = vmatpush1.msra.mxu0 0.0
  %1255 = vmatprep.subr.mxu0 0.0
  %1256 = vmatpush1.msra.mxu0 0.0
  %1257 = vmatprep.subr.mxu0 0.0
  %1258 = vmatpush1.msra.mxu0 0.0
  %1259 = vmatprep.subr.mxu0 0.0
  %1260 = vmatpush1.msra.mxu0 0.0
  %1261 = vmatprep.subr.mxu0 0.0
  %1262 = vmatpush1.msra.mxu0 0.0
  %1263 = vmatprep.subr.mxu0 0.0
  %1264 = vmatpush1.msra.mxu0 0.0
  %1265 = vmatprep.subr.mxu0 0.0
  %1266 = vmatpush1.msra.mxu0 0.0
  %1267 = vmatprep.subr.mxu0 0.0
  %1268 = vmatpush1.msra.mxu0 0.0
  %1269 = vmatprep.subr.mxu0 0.0
  %1270 = vmatpush1.msra.mxu0 0.0
  %1271 = vmatprep.subr.mxu0 0.0
  %1272 = vmatpush1.msra.mxu0 0.0
  %1273 = vmatprep.subr.mxu0 0.0
  %1274 = vmatpush1.msra.mxu0 0.0
  %1275 = vmatprep.subr.mxu0 0.0
  %1276 = vmatpush1.msra.mxu0 0.0
  %1277 = vmatprep.subr.mxu0 0.0
  %1278 = vmatpush1.msra.mxu0 0.0
  %1279 = vmatprep.subr.mxu0 0.0
  %1280 = vmatpush1.msra.mxu0 0.0
  %1281 = vmatprep.subr.mxu0 0.0
  %1282 = vmatpush1.msra.mxu0 0.0
  %1283 = vmatprep.mubr.f32.mxu0 0.0
  %1284 = vmatmul.mubr.f32.gmra.mrb[0].mxu0 %v1217
  %v1285 = vpop.f32.mrb[0].mxu0
  %v1286 = vadd.f32 0.0, %v1285
  %v1287 = vpop.f32.mrb[0].mxu0
  %1288 = vdwg.mxu0
  %1290 = vrot.lane.b32.xlu0 %v1213, 32
  %v1291 = vpop.permute.xlu0 %1290
  %v1292 = vsel %vm310, %v1291, 0
  %1294 = vmatprep.subr.mxu0 0.0
  %1295 = vmatpush1.msra.mxu0 %v295
  %1296 = vmatprep.subr.mxu0 0.0
  %1297 = vmatpush1.msra.mxu0 %v296
  %1298 = vmatprep.subr.mxu0 0.0
  %1299 = vmatpush1.msra.mxu0 %v297
  %1300 = vmatprep.subr.mxu0 0.0
  %1301 = vmatpush1.msra.mxu0 %v298
  %1302 = vmatprep.subr.mxu0 0.0
  %1303 = vmatpush1.msra.mxu0 0.0
  %1304 = vmatprep.subr.mxu0 0.0
  %1305 = vmatpush1.msra.mxu0 0.0
  %1306 = vmatprep.subr.mxu0 0.0
  %1307 = vmatpush1.msra.mxu0 0.0
  %1308 = vmatprep.subr.mxu0 0.0
  %1309 = vmatpush1.msra.mxu0 0.0
  %1310 = vmatprep.subr.mxu0 0.0
  %1311 = vmatpush1.msra.mxu0 0.0
  %1312 = vmatprep.subr.mxu0 0.0
  %1313 = vmatpush1.msra.mxu0 0.0
  %1314 = vmatprep.subr.mxu0 0.0
  %1315 = vmatpush1.msra.mxu0 0.0
  %1316 = vmatprep.subr.mxu0 0.0
  %1317 = vmatpush1.msra.mxu0 0.0
  %1318 = vmatprep.subr.mxu0 0.0
  %1319 = vmatpush1.msra.mxu0 0.0
  %1320 = vmatprep.subr.mxu0 0.0
  %1321 = vmatpush1.msra.mxu0 0.0
  %1322 = vmatprep.subr.mxu0 0.0
  %1323 = vmatpush1.msra.mxu0 0.0
  %1324 = vmatprep.subr.mxu0 0.0
  %1325 = vmatpush1.msra.mxu0 0.0
  %1326 = vmatprep.subr.mxu0 0.0
  %1327 = vmatpush1.msra.mxu0 0.0
  %1328 = vmatprep.subr.mxu0 0.0
  %1329 = vmatpush1.msra.mxu0 0.0
  %1330 = vmatprep.subr.mxu0 0.0
  %1331 = vmatpush1.msra.mxu0 0.0
  %1332 = vmatprep.subr.mxu0 0.0
  %1333 = vmatpush1.msra.mxu0 0.0
  %1334 = vmatprep.subr.mxu0 0.0
  %1335 = vmatpush1.msra.mxu0 0.0
  %1336 = vmatprep.subr.mxu0 0.0
  %1337 = vmatpush1.msra.mxu0 0.0
  %1338 = vmatprep.subr.mxu0 0.0
  %1339 = vmatpush1.msra.mxu0 0.0
  %1340 = vmatprep.subr.mxu0 0.0
  %1341 = vmatpush1.msra.mxu0 0.0
  %1342 = vmatprep.subr.mxu0 0.0
  %1343 = vmatpush1.msra.mxu0 0.0
  %1344 = vmatprep.subr.mxu0 0.0
  %1345 = vmatpush1.msra.mxu0 0.0
  %1346 = vmatprep.subr.mxu0 0.0
  %1347 = vmatpush1.msra.mxu0 0.0
  %1348 = vmatprep.subr.mxu0 0.0
  %1349 = vmatpush1.msra.mxu0 0.0
  %1350 = vmatprep.subr.mxu0 0.0
  %1351 = vmatpush1.msra.mxu0 0.0
  %1352 = vmatprep.subr.mxu0 0.0
  %1353 = vmatpush1.msra.mxu0 0.0
  %1354 = vmatprep.subr.mxu0 0.0
  %1355 = vmatpush1.msra.mxu0 0.0
  %1356 = vmatprep.subr.mxu0 0.0
  %1357 = vmatpush1.msra.mxu0 0.0
  %1358 = vmatprep.mubr.f32.mxu0 0.0
  %1359 = vmatmul.mubr.f32.gmra.mrb[0].mxu0 %v1292
  %v1360 = vpop.f32.mrb[0].mxu0
  %v1361 = vadd.f32 %v1286, %v1360
  %v1362 = vpop.f32.mrb[0].mxu0
  %1363 = vdwg.mxu0
  %v1364 = vadd.f32 %v1361, %v308
  %v1365 = vxor.u32 %v1364, 2147483648
  %v1366 = vmul.f32 %v1365, 1.442695
  %v1367 = vpow.pop %v1366
  %v1368 = vadd.f32 %v1367, 1.0
  %v1369 = vrcp.pop %v1368
  %v1370 = vmul.f32 1.0, %v1369
  %v1371 = vtanh.pop %v1364
  %v1372 = vmul.f32 %v1370, %v1112
  %1374 = vrot.lane.b32.xlu0 %v1371, 64
  %v1375 = vpop.permute.xlu0 %1374
  %v1377 = vmul.f32 %v1370, %v1375
  %1379 = vrot.lane.b32.xlu0 %v1377, 32
  %v1380 = vpop.permute.xlu0 %1379
  %v1382 = vadd.f32 %v1372, %v1380
  %v1383 = vtanh.pop %v1382
  %1385 = vrot.lane.b32.xlu0 %v1383, 64
  %v1386 = vpop.permute.xlu0 %1385
  %v1388 = vmul.f32 %v1370, %v1386
  %1389 = vmatprep.subr.mxu0 0.0
  %1390 = vmatpush1.msra.mxu0 %v77
  %1391 = vmatprep.subr.mxu0 0.0
  %1392 = vmatpush1.msra.mxu0 %v78
  %1393 = vmatprep.subr.mxu0 0.0
  %1394 = vmatpush1.msra.mxu0 %v79
  %1395 = vmatprep.subr.mxu0 0.0
  %1396 = vmatpush1.msra.mxu0 %v80
  %1397 = vmatprep.subr.mxu0 0.0
  %1398 = vmatpush1.msra.mxu0 0.0
  %1399 = vmatprep.subr.mxu0 0.0
  %1400 = vmatpush1.msra.mxu0 0.0
  %1401 = vmatprep.subr.mxu0 0.0
  %1402 = vmatpush1.msra.mxu0 0.0
  %1403 = vmatprep.subr.mxu0 0.0
  %1404 = vmatpush1.msra.mxu0 0.0
  %1405 = vmatprep.subr.mxu0 0.0
  %1406 = vmatpush1.msra.mxu0 0.0
  %1407 = vmatprep.subr.mxu0 0.0
  %1408 = vmatpush1.msra.mxu0 0.0
  %1409 = vmatprep.subr.mxu0 0.0
  %1410 = vmatpush1.msra.mxu0 0.0
  %1411 = vmatprep.subr.mxu0 0.0
  %1412 = vmatpush1.msra.mxu0 0.0
  %1413 = vmatprep.subr.mxu0 0.0
  %1414 = vmatpush1.msra.mxu0 0.0
  %1415 = vmatprep.subr.mxu0 0.0
  %1416 = vmatpush1.msra.mxu0 0.0
  %1417 = vmatprep.subr.mxu0 0.0
  %1418 = vmatpush1.msra.mxu0 0.0
  %1419 = vmatprep.subr.mxu0 0.0
  %1420 = vmatpush1.msra.mxu0 0.0
  %1421 = vmatprep.subr.mxu0 0.0
  %1422 = vmatpush1.msra.mxu0 0.0
  %1423 = vmatprep.subr.mxu0 0.0
  %1424 = vmatpush1.msra.mxu0 0.0
  %1425 = vmatprep.subr.mxu0 0.0
  %1426 = vmatpush1.msra.mxu0 0.0
  %1427 = vmatprep.subr.mxu0 0.0
  %1428 = vmatpush1.msra.mxu0 0.0
  %1429 = vmatprep.subr.mxu0 0.0
  %1430 = vmatpush1.msra.mxu0 0.0
  %1431 = vmatprep.subr.mxu0 0.0
  %1432 = vmatpush1.msra.mxu0 0.0
  %1433 = vmatprep.subr.mxu0 0.0
  %1434 = vmatpush1.msra.mxu0 0.0
  %1435 = vmatprep.subr.mxu0 0.0
  %1436 = vmatpush1.msra.mxu0 0.0
  %1437 = vmatprep.subr.mxu0 0.0
  %1438 = vmatpush1.msra.mxu0 0.0
  %1439 = vmatprep.subr.mxu0 0.0
  %1440 = vmatpush1.msra.mxu0 0.0
  %1441 = vmatprep.subr.mxu0 0.0
  %1442 = vmatpush1.msra.mxu0 0.0
  %1443 = vmatprep.subr.mxu0 0.0
  %1444 = vmatpush1.msra.mxu0 0.0
  %1445 = vmatprep.subr.mxu0 0.0
  %1446 = vmatpush1.msra.mxu0 0.0
  %1447 = vmatprep.subr.mxu0 0.0
  %1448 = vmatpush1.msra.mxu0 0.0
  %1449 = vmatprep.subr.mxu0 0.0
  %1450 = vmatpush1.msra.mxu0 0.0
  %1451 = vmatprep.subr.mxu0 0.0
  %1452 = vmatpush1.msra.mxu0 0.0
  %1453 = vmatprep.mubr.f32.mxu0 0.0
  %1454 = vmatmul.mubr.f32.gmra.mrb[0].mxu0 %v1292
  %v1455 = vpop.f32.mrb[0].mxu0
  %v1456 = vadd.f32 0.0, %v1455
  %v1457 = vpop.f32.mrb[0].mxu0
  %1458 = vdwg.mxu0
  %v1459 = vadd.f32 %v287, %v1456
  %v1460 = vxor.u32 %v1459, 2147483648
  %v1461 = vmul.f32 %v1460, 1.442695
  %v1462 = vpow.pop %v1461
  %v1463 = vadd.f32 %v1462, 1.0
  %v1464 = vrcp.pop %v1463
  %v1465 = vmul.f32 1.0, %v1464
  %v1466 = vtanh.pop %v1459
  %v1467 = vmul.f32 %v1465, %v1207
  %1469 = vrot.lane.b32.xlu0 %v1466, 64
  %v1470 = vpop.permute.xlu0 %1469
  %v1472 = vmul.f32 %v1465, %v1470
  %1474 = vrot.lane.b32.xlu0 %v1472, 32
  %v1475 = vpop.permute.xlu0 %1474
  %v1477 = vadd.f32 %v1467, %v1475
  %v1478 = vtanh.pop %v1477
  %1480 = vrot.lane.b32.xlu0 %v1478, 64
  %v1481 = vpop.permute.xlu0 %1480
  %v1483 = vmul.f32 %v1465, %v1481
  %1485 = vrot.lane.b32.xlu0 %v1388, 32
  %v1486 = vpop.permute.xlu0 %1485
  %v1487 = vsel %vm310, %v1486, 0
  %1489 = vmatprep.subr.mxu0 0.0
  %1490 = vmatpush1.msra.mxu0 %v299
  %1491 = vmatprep.subr.mxu0 0.0
  %1492 = vmatpush1.msra.mxu0 %v300
  %1493 = vmatprep.subr.mxu0 0.0
  %1494 = vmatpush1.msra.mxu0 %v301
  %1495 = vmatprep.subr.mxu0 0.0
  %1496 = vmatpush1.msra.mxu0 %v302
  %1497 = vmatprep.subr.mxu0 0.0
  %1498 = vmatpush1.msra.mxu0 0.0
  %1499 = vmatprep.subr.mxu0 0.0
  %1500 = vmatpush1.msra.mxu0 0.0
  %1501 = vmatprep.subr.mxu0 0.0
  %1502 = vmatpush1.msra.mxu0 0.0
  %1503 = vmatprep.subr.mxu0 0.0
  %1504 = vmatpush1.msra.mxu0 0.0
  %1505 = vmatprep.subr.mxu0 0.0
  %1506 = vmatpush1.msra.mxu0 0.0
  %1507 = vmatprep.subr.mxu0 0.0
  %1508 = vmatpush1.msra.mxu0 0.0
  %1509 = vmatprep.subr.mxu0 0.0
  %1510 = vmatpush1.msra.mxu0 0.0
  %1511 = vmatprep.subr.mxu0 0.0
  %1512 = vmatpush1.msra.mxu0 0.0
  %1513 = vmatprep.subr.mxu0 0.0
  %1514 = vmatpush1.msra.mxu0 0.0
  %1515 = vmatprep.subr.mxu0 0.0
  %1516 = vmatpush1.msra.mxu0 0.0
  %1517 = vmatprep.subr.mxu0 0.0
  %1518 = vmatpush1.msra.mxu0 0.0
  %1519 = vmatprep.subr.mxu0 0.0
  %1520 = vmatpush1.msra.mxu0 0.0
  %1521 = vmatprep.subr.mxu0 0.0
  %1522 = vmatpush1.msra.mxu0 0.0
  %1523 = vmatprep.subr.mxu0 0.0
  %1524 = vmatpush1.msra.mxu0 0.0
  %1525 = vmatprep.subr.mxu0 0.0
  %1526 = vmatpush1.msra.mxu0 0.0
  %1527 = vmatprep.subr.mxu0 0.0
  %1528 = vmatpush1.msra.mxu0 0.0
  %1529 = vmatprep.subr.mxu0 0.0
  %1530 = vmatpush1.msra.mxu0 0.0
  %1531 = vmatprep.subr.mxu0 0.0
  %1532 = vmatpush1.msra.mxu0 0.0
  %1533 = vmatprep.subr.mxu0 0.0
  %1534 = vmatpush1.msra.mxu0 0.0
  %1535 = vmatprep.subr.mxu0 0.0
  %1536 = vmatpush1.msra.mxu0 0.0
  %1537 = vmatprep.subr.mxu0 0.0
  %1538 = vmatpush1.msra.mxu0 0.0
  %1539 = vmatprep.subr.mxu0 0.0
  %1540 = vmatpush1.msra.mxu0 0.0
  %1541 = vmatprep.subr.mxu0 0.0
  %1542 = vmatpush1.msra.mxu0 0.0
  %1543 = vmatprep.subr.mxu0 0.0
  %1544 = vmatpush1.msra.mxu0 0.0
  %1545 = vmatprep.subr.mxu0 0.0
  %1546 = vmatpush1.msra.mxu0 0.0
  %1547 = vmatprep.subr.mxu0 0.0
  %1548 = vmatpush1.msra.mxu0 0.0
  %1549 = vmatprep.subr.mxu0 0.0
  %1550 = vmatpush1.msra.mxu0 0.0
  %1551 = vmatprep.subr.mxu0 0.0
  %1552 = vmatpush1.msra.mxu0 0.0
  %1553 = vmatprep.mubr.f32.mxu0 0.0
  %1554 = vmatmul.mubr.f32.gmra.mrb[0].mxu0 %v1487
  %v1555 = vpop.f32.mrb[0].mxu0
  %v1556 = vadd.f32 0.0, %v1555
  %v1557 = vpop.f32.mrb[0].mxu0
  %1558 = vdwg.mxu0
  %1560 = vrot.lane.b32.xlu0 %v1483, 32
  %v1561 = vpop.permute.xlu0 %1560
  %v1562 = vsel %vm310, %v1561, 0
  %1564 = vmatprep.subr.mxu0 0.0
  %1565 = vmatpush1.msra.mxu0 %v295
  %1566 = vmatprep.subr.mxu0 0.0
  %1567 = vmatpush1.msra.mxu0 %v296
  %1568 = vmatprep.subr.mxu0 0.0
  %1569 = vmatpush1.msra.mxu0 %v297
  %1570 = vmatprep.subr.mxu0 0.0
  %1571 = vmatpush1.msra.mxu0 %v298
  %1572 = vmatprep.subr.mxu0 0.0
  %1573 = vmatpush1.msra.mxu0 0.0
  %1574 = vmatprep.subr.mxu0 0.0
  %1575 = vmatpush1.msra.mxu0 0.0
  %1576 = vmatprep.subr.mxu0 0.0
  %1577 = vmatpush1.msra.mxu0 0.0
  %1578 = vmatprep.subr.mxu0 0.0
  %1579 = vmatpush1.msra.mxu0 0.0
  %1580 = vmatprep.subr.mxu0 0.0
  %1581 = vmatpush1.msra.mxu0 0.0
  %1582 = vmatprep.subr.mxu0 0.0
  %1583 = vmatpush1.msra.mxu0 0.0
  %1584 = vmatprep.subr.mxu0 0.0
  %1585 = vmatpush1.msra.mxu0 0.0
  %1586 = vmatprep.subr.mxu0 0.0
  %1587 = vmatpush1.msra.mxu0 0.0
  %1588 = vmatprep.subr.mxu0 0.0
  %1589 = vmatpush1.msra.mxu0 0.0
  %1590 = vmatprep.subr.mxu0 0.0
  %1591 = vmatpush1.msra.mxu0 0.0
  %1592 = vmatprep.subr.mxu0 0.0
  %1593 = vmatpush1.msra.mxu0 0.0
  %1594 = vmatprep.subr.mxu0 0.0
  %1595 = vmatpush1.msra.mxu0 0.0
  %1596 = vmatprep.subr.mxu0 0.0
  %1597 = vmatpush1.msra.mxu0 0.0
  %1598 = vmatprep.subr.mxu0 0.0
  %1599 = vmatpush1.msra.mxu0 0.0
  %1600 = vmatprep.subr.mxu0 0.0
  %1601 = vmatpush1.msra.mxu0 0.0
  %1602 = vmatprep.subr.mxu0 0.0
  %1603 = vmatpush1.msra.mxu0 0.0
  %1604 = vmatprep.subr.mxu0 0.0
  %1605 = vmatpush1.msra.mxu0 0.0
  %1606 = vmatprep.subr.mxu0 0.0
  %1607 = vmatpush1.msra.mxu0 0.0
  %1608 = vmatprep.subr.mxu0 0.0
  %1609 = vmatpush1.msra.mxu0 0.0
  %1610 = vmatprep.subr.mxu0 0.0
  %1611 = vmatpush1.msra.mxu0 0.0
  %1612 = vmatprep.subr.mxu0 0.0
  %1613 = vmatpush1.msra.mxu0 0.0
  %1614 = vmatprep.subr.mxu0 0.0
  %1615 = vmatpush1.msra.mxu0 0.0
  %1616 = vmatprep.subr.mxu0 0.0
  %1617 = vmatpush1.msra.mxu0 0.0
  %1618 = vmatprep.subr.mxu0 0.0
  %1619 = vmatpush1.msra.mxu0 0.0
  %1620 = vmatprep.subr.mxu0 0.0
  %1621 = vmatpush1.msra.mxu0 0.0
  %1622 = vmatprep.subr.mxu0 0.0
  %1623 = vmatpush1.msra.mxu0 0.0
  %1624 = vmatprep.subr.mxu0 0.0
  %1625 = vmatpush1.msra.mxu0 0.0
  %1626 = vmatprep.subr.mxu0 0.0
  %1627 = vmatpush1.msra.mxu0 0.0
  %1628 = vmatprep.mubr.f32.mxu0 0.0
  %1629 = vmatmul.mubr.f32.gmra.mrb[0].mxu0 %v1562
  %v1630 = vpop.f32.mrb[0].mxu0
  %v1631 = vadd.f32 %v1556, %v1630
  %v1632 = vpop.f32.mrb[0].mxu0
  %1633 = vdwg.mxu0
  %v1634 = vadd.f32 %v1631, %v308
  %v1635 = vxor.u32 %v1634, 2147483648
  %v1636 = vmul.f32 %v1635, 1.442695
  %v1637 = vpow.pop %v1636
  %v1638 = vadd.f32 %v1637, 1.0
  %v1639 = vrcp.pop %v1638
  %v1640 = vmul.f32 1.0, %v1639
  %v1641 = vtanh.pop %v1634
  %v1642 = vmul.f32 %v1640, %v1382
  %1644 = vrot.lane.b32.xlu0 %v1641, 64
  %v1645 = vpop.permute.xlu0 %1644
  %v1647 = vmul.f32 %v1640, %v1645
  %1649 = vrot.lane.b32.xlu0 %v1647, 32
  %v1650 = vpop.permute.xlu0 %1649
  %v1652 = vadd.f32 %v1642, %v1650
  %v1653 = vtanh.pop %v1652
  %1655 = vrot.lane.b32.xlu0 %v1653, 64
  %v1656 = vpop.permute.xlu0 %1655
  %v1658 = vmul.f32 %v1640, %v1656
  %1659 = vmatprep.subr.mxu0 0.0
  %1660 = vmatpush1.msra.mxu0 %v77
  %1661 = vmatprep.subr.mxu0 0.0
  %1662 = vmatpush1.msra.mxu0 %v78
  %1663 = vmatprep.subr.mxu0 0.0
  %1664 = vmatpush1.msra.mxu0 %v79
  %1665 = vmatprep.subr.mxu0 0.0
  %1666 = vmatpush1.msra.mxu0 %v80
  %1667 = vmatprep.subr.mxu0 0.0
  %1668 = vmatpush1.msra.mxu0 0.0
  %1669 = vmatprep.subr.mxu0 0.0
  %1670 = vmatpush1.msra.mxu0 0.0
  %1671 = vmatprep.subr.mxu0 0.0
  %1672 = vmatpush1.msra.mxu0 0.0
  %1673 = vmatprep.subr.mxu0 0.0
  %1674 = vmatpush1.msra.mxu0 0.0
  %1675 = vmatprep.subr.mxu0 0.0
  %1676 = vmatpush1.msra.mxu0 0.0
  %1677 = vmatprep.subr.mxu0 0.0
  %1678 = vmatpush1.msra.mxu0 0.0
  %1679 = vmatprep.subr.mxu0 0.0
  %1680 = vmatpush1.msra.mxu0 0.0
  %1681 = vmatprep.subr.mxu0 0.0
  %1682 = vmatpush1.msra.mxu0 0.0
  %1683 = vmatprep.subr.mxu0 0.0
  %1684 = vmatpush1.msra.mxu0 0.0
  %1685 = vmatprep.subr.mxu0 0.0
  %1686 = vmatpush1.msra.mxu0 0.0
  %1687 = vmatprep.subr.mxu0 0.0
  %1688 = vmatpush1.msra.mxu0 0.0
  %1689 = vmatprep.subr.mxu0 0.0
  %1690 = vmatpush1.msra.mxu0 0.0
  %1691 = vmatprep.subr.mxu0 0.0
  %1692 = vmatpush1.msra.mxu0 0.0
  %1693 = vmatprep.subr.mxu0 0.0
  %1694 = vmatpush1.msra.mxu0 0.0
  %1695 = vmatprep.subr.mxu0 0.0
  %1696 = vmatpush1.msra.mxu0 0.0
  %1697 = vmatprep.subr.mxu0 0.0
  %1698 = vmatpush1.msra.mxu0 0.0
  %1699 = vmatprep.subr.mxu0 0.0
  %1700 = vmatpush1.msra.mxu0 0.0
  %1701 = vmatprep.subr.mxu0 0.0
  %1702 = vmatpush1.msra.mxu0 0.0
  %1703 = vmatprep.subr.mxu0 0.0
  %1704 = vmatpush1.msra.mxu0 0.0
  %1705 = vmatprep.subr.mxu0 0.0
  %1706 = vmatpush1.msra.mxu0 0.0
  %1707 = vmatprep.subr.mxu0 0.0
  %1708 = vmatpush1.msra.mxu0 0.0
  %1709 = vmatprep.subr.mxu0 0.0
  %1710 = vmatpush1.msra.mxu0 0.0
  %1711 = vmatprep.subr.mxu0 0.0
  %1712 = vmatpush1.msra.mxu0 0.0
  %1713 = vmatprep.subr.mxu0 0.0
  %1714 = vmatpush1.msra.mxu0 0.0
  %1715 = vmatprep.subr.mxu0 0.0
  %1716 = vmatpush1.msra.mxu0 0.0
  %1717 = vmatprep.subr.mxu0 0.0
  %1718 = vmatpush1.msra.mxu0 0.0
  %1719 = vmatprep.subr.mxu0 0.0
  %1720 = vmatpush1.msra.mxu0 0.0
  %1721 = vmatprep.subr.mxu0 0.0
  %1722 = vmatpush1.msra.mxu0 0.0
  %1723 = vmatprep.mubr.f32.mxu0 0.0
  %1724 = vmatmul.mubr.f32.gmra.mrb[0].mxu0 %v1562
  %v1725 = vpop.f32.mrb[0].mxu0
  %v1726 = vadd.f32 0.0, %v1725
  %v1727 = vpop.f32.mrb[0].mxu0
  %1728 = vdwg.mxu0
  %v1729 = vadd.f32 %v292, %v1726
  %v1730 = vxor.u32 %v1729, 2147483648
  %v1731 = vmul.f32 %v1730, 1.442695
  %v1732 = vpow.pop %v1731
  %v1733 = vadd.f32 %v1732, 1.0
  %v1734 = vrcp.pop %v1733
  %v1735 = vmul.f32 1.0, %v1734
  %v1736 = vtanh.pop %v1729
  %v1737 = vmul.f32 %v1735, %v1477
  %1739 = vrot.lane.b32.xlu0 %v1736, 64
  %v1740 = vpop.permute.xlu0 %1739
  %v1742 = vmul.f32 %v1735, %v1740
  %1744 = vrot.lane.b32.xlu0 %v1742, 32
  %v1745 = vpop.permute.xlu0 %1744
  %v1747 = vadd.f32 %v1737, %v1745
  %v1748 = vtanh.pop %v1747
  %1750 = vrot.lane.b32.xlu0 %v1748, 64
  %v1751 = vpop.permute.xlu0 %1750
  %v1753 = vmul.f32 %v1735, %v1751
  %1755 = vrot.lane.b32.xlu0 %v1658, 32
  %v1756 = vpop.permute.xlu0 %1755
  %v1757 = vsel %vm310, %v1756, 0
  %1759 = vmatprep.subr.mxu0 0.0
  %1760 = vmatpush1.msra.mxu0 %v299
  %1761 = vmatprep.subr.mxu0 0.0
  %1762 = vmatpush1.msra.mxu0 %v300
  %1763 = vmatprep.subr.mxu0 0.0
  %1764 = vmatpush1.msra.mxu0 %v301
  %1765 = vmatprep.subr.mxu0 0.0
  %1766 = vmatpush1.msra.mxu0 %v302
  %1767 = vmatprep.subr.mxu0 0.0
  %1768 = vmatpush1.msra.mxu0 0.0
  %1769 = vmatprep.subr.mxu0 0.0
  %1770 = vmatpush1.msra.mxu0 0.0
  %1771 = vmatprep.subr.mxu0 0.0
  %1772 = vmatpush1.msra.mxu0 0.0
  %1773 = vmatprep.subr.mxu0 0.0
  %1774 = vmatpush1.msra.mxu0 0.0
  %1775 = vmatprep.subr.mxu0 0.0
  %1776 = vmatpush1.msra.mxu0 0.0
  %1777 = vmatprep.subr.mxu0 0.0
  %1778 = vmatpush1.msra.mxu0 0.0
  %1779 = vmatprep.subr.mxu0 0.0
  %1780 = vmatpush1.msra.mxu0 0.0
  %1781 = vmatprep.subr.mxu0 0.0
  %1782 = vmatpush1.msra.mxu0 0.0
  %1783 = vmatprep.subr.mxu0 0.0
  %1784 = vmatpush1.msra.mxu0 0.0
  %1785 = vmatprep.subr.mxu0 0.0
  %1786 = vmatpush1.msra.mxu0 0.0
  %1787 = vmatprep.subr.mxu0 0.0
  %1788 = vmatpush1.msra.mxu0 0.0
  %1789 = vmatprep.subr.mxu0 0.0
  %1790 = vmatpush1.msra.mxu0 0.0
  %1791 = vmatprep.subr.mxu0 0.0
  %1792 = vmatpush1.msra.mxu0 0.0
  %1793 = vmatprep.subr.mxu0 0.0
  %1794 = vmatpush1.msra.mxu0 0.0
  %1795 = vmatprep.subr.mxu0 0.0
  %1796 = vmatpush1.msra.mxu0 0.0
  %1797 = vmatprep.subr.mxu0 0.0
  %1798 = vmatpush1.msra.mxu0 0.0
  %1799 = vmatprep.subr.mxu0 0.0
  %1800 = vmatpush1.msra.mxu0 0.0
  %1801 = vmatprep.subr.mxu0 0.0
  %1802 = vmatpush1.msra.mxu0 0.0
  %1803 = vmatprep.subr.mxu0 0.0
  %1804 = vmatpush1.msra.mxu0 0.0
  %1805 = vmatprep.subr.mxu0 0.0
  %1806 = vmatpush1.msra.mxu0 0.0
  %1807 = vmatprep.subr.mxu0 0.0
  %1808 = vmatpush1.msra.mxu0 0.0
  %1809 = vmatprep.subr.mxu0 0.0
  %1810 = vmatpush1.msra.mxu0 0.0
  %1811 = vmatprep.subr.mxu0 0.0
  %1812 = vmatpush1.msra.mxu0 0.0
  %1813 = vmatprep.subr.mxu0 0.0
  %1814 = vmatpush1.msra.mxu0 0.0
  %1815 = vmatprep.subr.mxu0 0.0
  %1816 = vmatpush1.msra.mxu0 0.0
  %1817 = vmatprep.subr.mxu0 0.0
  %1818 = vmatpush1.msra.mxu0 0.0
  %1819 = vmatprep.subr.mxu0 0.0
  %1820 = vmatpush1.msra.mxu0 0.0
  %1821 = vmatprep.subr.mxu0 0.0
  %1822 = vmatpush1.msra.mxu0 0.0
  %1823 = vmatprep.mubr.f32.mxu0 0.0
  %1824 = vmatmul.mubr.f32.gmra.mrb[0].mxu0 %v1757
  %v1825 = vpop.f32.mrb[0].mxu0
  %v1826 = vadd.f32 0.0, %v1825
  %v1827 = vpop.f32.mrb[0].mxu0
  %1828 = vdwg.mxu0
  %1830 = vrot.lane.b32.xlu0 %v1753, 32
  %v1831 = vpop.permute.xlu0 %1830
  %v1832 = vsel %vm310, %v1831, 0
  %1834 = vmatprep.subr.mxu0 0.0
  %1835 = vmatpush1.msra.mxu0 %v295
  %1836 = vmatprep.subr.mxu0 0.0
  %1837 = vmatpush1.msra.mxu0 %v296
  %1838 = vmatprep.subr.mxu0 0.0
  %1839 = vmatpush1.msra.mxu0 %v297
  %1840 = vmatprep.subr.mxu0 0.0
  %1841 = vmatpush1.msra.mxu0 %v298
  %1842 = vmatprep.subr.mxu0 0.0
  %1843 = vmatpush1.msra.mxu0 0.0
  %1844 = vmatprep.subr.mxu0 0.0
  %1845 = vmatpush1.msra.mxu0 0.0
  %1846 = vmatprep.subr.mxu0 0.0
  %1847 = vmatpush1.msra.mxu0 0.0
  %1848 = vmatprep.subr.mxu0 0.0
  %1849 = vmatpush1.msra.mxu0 0.0
  %1850 = vmatprep.subr.mxu0 0.0
  %1851 = vmatpush1.msra.mxu0 0.0
  %1852 = vmatprep.subr.mxu0 0.0
  %1853 = vmatpush1.msra.mxu0 0.0
  %1854 = vmatprep.subr.mxu0 0.0
  %1855 = vmatpush1.msra.mxu0 0.0
  %1856 = vmatprep.subr.mxu0 0.0
  %1857 = vmatpush1.msra.mxu0 0.0
  %1858 = vmatprep.subr.mxu0 0.0
  %1859 = vmatpush1.msra.mxu0 0.0
  %1860 = vmatprep.subr.mxu0 0.0
  %1861 = vmatpush1.msra.mxu0 0.0
  %1862 = vmatprep.subr.mxu0 0.0
  %1863 = vmatpush1.msra.mxu0 0.0
  %1864 = vmatprep.subr.mxu0 0.0
  %1865 = vmatpush1.msra.mxu0 0.0
  %1866 = vmatprep.subr.mxu0 0.0
  %1867 = vmatpush1.msra.mxu0 0.0
  %1868 = vmatprep.subr.mxu0 0.0
  %1869 = vmatpush1.msra.mxu0 0.0
  %1870 = vmatprep.subr.mxu0 0.0
  %1871 = vmatpush1.msra.mxu0 0.0
  %1872 = vmatprep.subr.mxu0 0.0
  %1873 = vmatpush1.msra.mxu0 0.0
  %1874 = vmatprep.subr.mxu0 0.0
  %1875 = vmatpush1.msra.mxu0 0.0
  %1876 = vmatprep.subr.mxu0 0.0
  %1877 = vmatpush1.msra.mxu0 0.0
  %1878 = vmatprep.subr.mxu0 0.0
  %1879 = vmatpush1.msra.mxu0 0.0
  %1880 = vmatprep.subr.mxu0 0.0
  %1881 = vmatpush1.msra.mxu0 0.0
  %1882 = vmatprep.subr.mxu0 0.0
  %1883 = vmatpush1.msra.mxu0 0.0
  %1884 = vmatprep.subr.mxu0 0.0
  %1885 = vmatpush1.msra.mxu0 0.0
  %1886 = vmatprep.subr.mxu0 0.0
  %1887 = vmatpush1.msra.mxu0 0.0
  %1888 = vmatprep.subr.mxu0 0.0
  %1889 = vmatpush1.msra.mxu0 0.0
  %1890 = vmatprep.subr.mxu0 0.0
  %1891 = vmatpush1.msra.mxu0 0.0
  %1892 = vmatprep.subr.mxu0 0.0
  %1893 = vmatpush1.msra.mxu0 0.0
  %1894 = vmatprep.subr.mxu0 0.0
  %1895 = vmatpush1.msra.mxu0 0.0
  %1896 = vmatprep.subr.mxu0 0.0
  %1897 = vmatpush1.msra.mxu0 0.0
  %1898 = vmatprep.mubr.f32.mxu0 0.0
  %1899 = vmatmul.mubr.f32.gmra.mrb[0].mxu0 %v1832
  %v1900 = vpop.f32.mrb[0].mxu0
  %v1901 = vadd.f32 %v1826, %v1900
  %v1902 = vpop.f32.mrb[0].mxu0
  %1903 = vdwg.mxu0
  %v1904 = vadd.f32 %v1901, %v308
  %v1905 = vxor.u32 %v1904, 2147483648
  %v1906 = vmul.f32 %v1905, 1.442695
  %v1907 = vpow.pop %v1906
  %v1908 = vadd.f32 %v1907, 1.0
  %v1909 = vrcp.pop %v1908
  %v1910 = vmul.f32 1.0, %v1909
  %v1911 = vtanh.pop %v1904
  %v1912 = vmul.f32 %v1910, %v1652
  %1914 = vrot.lane.b32.xlu0 %v1911, 64
  %v1915 = vpop.permute.xlu0 %1914
  %v1917 = vmul.f32 %v1910, %v1915
  %1919 = vrot.lane.b32.xlu0 %v1917, 32
  %v1920 = vpop.permute.xlu0 %1919
  %v1922 = vadd.f32 %v1912, %v1920
  %v1923 = vtanh.pop %v1922
  %1925 = vrot.lane.b32.xlu0 %v1923, 64
  %v1926 = vpop.permute.xlu0 %1925
  %v1928 = vmul.f32 %v1910, %v1926
  %1930 = vst.msk [vmem:[%s8] sm:$0xff] %vm310, %v1831
  %1932 = vrot.lane.b32.xlu0 %v1747, 96
  %v1933 = vpop.permute.xlu0 %1932
  %1935 = vst.msk [vmem:[%s9] sm:$0xff] %vm310, %v1933
  %1937 = vrot.lane.b32.xlu0 %v1928, 32
  %v1938 = vpop.permute.xlu0 %1937
  %s1940 = scalar_lea.vmem %s8, 8
  %1941 = vst.msk [vmem:[%s1940] sm:$0xff] %vm310, %v1938
  %1943 = vrot.lane.b32.xlu0 %v1922, 96
  %v1944 = vpop.permute.xlu0 %1943
  %s1946 = scalar_lea.vmem %s9, 8
  %1947 = vst.msk [vmem:[%s1946] sm:$0xff] %vm310, %v1944
  // Predicated region
  $region34: #{encoder_forward.1} parent=0 // pred_check
    _
  $region35: #{encoder_forward.1} parent=0 // pred_check_branch
    %1949 = sbr.rel (0) target = $region37
  $region36: #{encoder_forward.1} parent=0 // pred_region
    _
  $region37: #{encoder_forward.1} parent=0 // pred_fallthru
    _
  // Predicated region
  $region38: #{encoder_forward.1} parent=0 // pred_check
    _
  $region39: #{encoder_forward.1} parent=0 // pred_check_branch
    %1951 = sbr.rel (0) target = $region41
  $region40: #{encoder_forward.1} parent=0 // pred_region
    _
  $region41: #{encoder_forward.1} parent=0 // pred_fallthru
    _
  // Predicated region
  $region42: #{encoder_forward.1} parent=0 // pred_check
    _
  $region43: #{encoder_forward.1} parent=0 // pred_check_branch
    %1953 = sbr.rel (0) target = $region45
  $region44: #{encoder_forward.1} parent=0 // pred_region
    _
  $region45: #{encoder_forward.1} parent=0 // pred_fallthru
    _
  // Predicated region
  $region46: #{encoder_forward.1} parent=0 // pred_check
    _
  $region47: #{encoder_forward.1} parent=0 // pred_check_branch
    %1955 = sbr.rel (0) target = $region49
  $region48: #{encoder_forward.1} parent=0 // pred_region
    _
  $region49: #{encoder_forward.1} parent=0 // pred_fallthru
    _

</llo_original>
